<compile_context>
chip_gen: v5e
topology: v5e:2x2
jax: 0.10.0
libtpu: 0.0.40
codegen_flags: <defaults>
</compile_context>

<pallas_src>
import math

import jax
import jax.numpy as jnp
from jax import lax
from jax.experimental import pallas as pl
from jax.experimental.pallas import tpu as pltpu

# ----------------------------- config (small, deterministic) -----------------------------
VOCAB = 30
MAX_POS = 16
TYPE_VOCAB = 2
DIM = 32          # config.dim_model / hidden_size
HEADS = 2
HEAD_DIM = DIM // HEADS
FFN = 64
LAYERS = 2
BATCH = 2
SEQ = 8
LN_EPS = 1e-12    # BERT LayerNorm eps
NUM_LABELS = 2
M = BATCH * SEQ
SCALE = 1.0 / math.sqrt(HEAD_DIM)


# ----------------------------- in-kernel math helpers -----------------------------
def _erf(x):
    # Abramowitz & Stegun 7.1.26 polynomial (|err| <= 1.5e-7, i.e. f32-exact in practice).
    # Used so the exact-erf GELU can live inside the kernel without a lax.erf Mosaic lowering.
    p = 0.3275911
    a1, a2, a3, a4, a5 = 0.254829592, -0.284496736, 1.421413741, -1.453152027, 1.061405429
    sgn = jnp.where(x >= 0.0, 1.0, -1.0)
    ax = jnp.abs(x)
    t = 1.0 / (1.0 + p * ax)
    poly = ((((a5 * t + a4) * t + a3) * t + a2) * t + a1) * t
    return sgn * (1.0 - poly * jnp.exp(-ax * ax))


def _gelu_exact(x):
    return 0.5 * x * (1.0 + _erf(x * (1.0 / math.sqrt(2.0))))


def _layernorm(x, g, b):
    # biased variance, like torch.nn.LayerNorm
    mu = jnp.mean(x, axis=-1, keepdims=True)
    xc = x - mu
    var = jnp.mean(xc * xc, axis=-1, keepdims=True)
    return xc * lax.rsqrt(var + LN_EPS) * g + b


# ----------------------------- fused encoder kernel -----------------------------
def _encoder_kernel(emb_ref, bias_ref, eg_ref, eb_ref,
                    wqkv_ref, bqkv_ref, wo_ref, bo_ref,
                    ln1g_ref, ln1b_ref, w1_ref, b1_ref,
                    w2_ref, b2_ref, ln2g_ref, ln2b_ref,
                    h_ref):
    """One grid step == one BertLayer.  h_ref is the VMEM-resident carried hidden state."""
    l = pl.program_id(0)

    @pl.when(l == 0)
    def _():
        # Embedding LayerNorm fused into the first grid step.
        h_ref[...] = _layernorm(emb_ref[...], eg_ref[...], eb_ref[...])

    h = h_ref[...]                                     # (M, D)
    bias = bias_ref[...]                               # (M, M) additive mask (0 / -10000)

    # ---- fused QKV projection: one (M, D) x (D, 3D) MXU pass ----
    qkv = jnp.dot(h, wqkv_ref[0], preferred_element_type=jnp.float32) + bqkv_ref[0]

    # ---- attention: all batch rows at once per head; the block-diagonal -10000 bias keeps
    #      cross-batch logits so low that exp() underflows to exactly 0 -> per-batch softmax ----
    ctx_parts = []
    for hh in range(HEADS):                            # static unrolled loop, stays in-kernel
        lo = hh * HEAD_DIM
        qh = qkv[:, lo:lo + HEAD_DIM]                  # (M, Dh)
        kh = qkv[:, DIM + lo:DIM + lo + HEAD_DIM]      # (M, Dh)
        vh = qkv[:, 2 * DIM + lo:2 * DIM + lo + HEAD_DIM]
        s = lax.dot_general(qh, kh, (((1,), (1,)), ((), ())),
                            preferred_element_type=jnp.float32) * SCALE + bias
        s = s - jnp.max(s, axis=-1, keepdims=True)
        p = jnp.exp(s)
        # divide -> EUP approximate reciprocal (frees VALU slots)
        p = p * pl.reciprocal(jnp.sum(p, axis=-1, keepdims=True), approx=True)
        ctx_parts.append(jnp.dot(p, vh, preferred_element_type=jnp.float32))
    ctx = jnp.concatenate(ctx_parts, axis=-1)          # (M, D)

    # ---- output projection + residual + LayerNorm ----
    attn_out = jnp.dot(ctx, wo_ref[0], preferred_element_type=jnp.float32) + bo_ref[0]
    h1 = _layernorm(h + attn_out, ln1g_ref[0], ln1b_ref[0])

    # ---- FFN with fused GELU epilogue + residual + LayerNorm ----
    inter = _gelu_exact(
        jnp.dot(h1, w1_ref[0], preferred_element_type=jnp.float32) + b1_ref[0])
    ffn_out = jnp.dot(inter, w2_ref[0], preferred_element_type=jnp.float32) + b2_ref[0]
    h_ref[...] = _layernorm(h1 + ffn_out, ln2g_ref[0], ln2b_ref[0])


def bert_encoder(emb2d, attn_bias, emb_ln_g, emb_ln_b, enc):
    """emb2d: (M, D) f32; attn_bias: (M, M) f32; enc: dict of layer-stacked weights."""
    D = DIM
    per_layer = lambda l: (l, 0, 0)
    whole2 = lambda l: (0, 0)
    in_specs = [
        pl.BlockSpec((M, D), whole2),             # embeddings (read at layer 0)
        pl.BlockSpec((M, M), whole2),             # additive attention bias
        pl.BlockSpec((1, D), whole2),             # embedding LN gamma
        pl.BlockSpec((1, D), whole2),             # embedding LN beta
        pl.BlockSpec((1, D, 3 * D), per_layer),   # fused Wqkv
        pl.BlockSpec((1, 1, 3 * D), per_layer),   # fused bqkv
        pl.BlockSpec((1, D, D), per_layer),       # Wo
        pl.BlockSpec((1, 1, D), per_layer),       # bo
        pl.BlockSpec((1, 1, D), per_layer),       # LN1 gamma
        pl.BlockSpec((1, 1, D), per_layer),       # LN1 beta
        pl.BlockSpec((1, D, FFN), per_layer),     # W1
        pl.BlockSpec((1, 1, FFN), per_layer),     # b1
        pl.BlockSpec((1, FFN, D), per_layer),     # W2
        pl.BlockSpec((1, 1, D), per_layer),       # b2
        pl.BlockSpec((1, 1, D), per_layer),       # LN2 gamma
        pl.BlockSpec((1, 1, D), per_layer),       # LN2 beta
    ]
    return pl.pallas_call(
        _encoder_kernel,
        out_shape=jax.ShapeDtypeStruct((M, D), jnp.float32),
        grid=(LAYERS,),
        in_specs=in_specs,
        # constant output index_map across the layer axis -> h stays resident in VMEM,
        # written back to HBM only once after the last layer.
        out_specs=pl.BlockSpec((M, D), whole2),
        compiler_params=pltpu.CompilerParams(
            dimension_semantics=("arbitrary",)),   # sequential carry across layers
    )(emb2d, attn_bias, emb_ln_g, emb_ln_b,
      enc["wqkv"], enc["bqkv"], enc["wo"], enc["bo"],
      enc["ln1_g"], enc["ln1_b"], enc["w1"], enc["b1"],
      enc["w2"], enc["b2"], enc["ln2_g"], enc["ln2_b"])


# ----------------------------- parameter construction -----------------------------
def init_params(key):
    def normal(key, shape, scale=0.02):
        return (scale * jax.random.normal(key, shape)).astype(jnp.float32)

    keys = iter(jax.random.split(key, 8 + LAYERS * 16))
    p = {
        "word_emb": normal(next(keys), (VOCAB, DIM)),
        "pos_emb": normal(next(keys), (MAX_POS, DIM)),
        "type_emb": normal(next(keys), (TYPE_VOCAB, DIM)),
        "emb_ln_g": jnp.ones((1, DIM), jnp.float32),
        "emb_ln_b": jnp.zeros((1, DIM), jnp.float32),
        # classification head: Linear(dim_model, 2)  (stored as [K, N])
        "dense_w": normal(next(keys), (DIM, NUM_LABELS)),
        "dense_b": jnp.zeros((NUM_LABELS,), jnp.float32),
    }
    wqkv, bqkv, wo, bo = [], [], [], []
    ln1g, ln1b, w1, b1, w2, b2, ln2g, ln2b = [], [], [], [], [], [], [], []
    for _ in range(LAYERS):
        wq = normal(next(keys), (DIM, DIM))
        wk = normal(next(keys), (DIM, DIM))
        wv = normal(next(keys), (DIM, DIM))
        wqkv.append(jnp.concatenate([wq, wk, wv], axis=1))        # (D, 3D) fused
        bqkv.append(jnp.zeros((1, 3 * DIM), jnp.float32))
        wo.append(normal(next(keys), (DIM, DIM)))
        bo.append(jnp.zeros((1, DIM), jnp.float32))
        ln1g.append(jnp.ones((1, DIM), jnp.float32))
        ln1b.append(jnp.zeros((1, DIM), jnp.float32))
        w1.append(normal(next(keys), (DIM, FFN)))
        b1.append(jnp.zeros((1, FFN), jnp.float32))
        w2.append(normal(next(keys), (FFN, DIM)))
        b2.append(jnp.zeros((1, DIM), jnp.float32))
        ln2g.append(jnp.ones((1, DIM), jnp.float32))
        ln2b.append(jnp.zeros((1, DIM), jnp.float32))
    p["enc"] = {
        "wqkv": jnp.stack(wqkv), "bqkv": jnp.stack(bqkv),
        "wo": jnp.stack(wo), "bo": jnp.stack(bo),
        "ln1_g": jnp.stack(ln1g), "ln1_b": jnp.stack(ln1b),
        "w1": jnp.stack(w1), "b1": jnp.stack(b1),
        "w2": jnp.stack(w2), "b2": jnp.stack(b2),
        "ln2_g": jnp.stack(ln2g), "ln2_b": jnp.stack(ln2b),
    }
    return p


# ----------------------------- forward pass -----------------------------
def bert_model_forward(params, input_ids, attention_mask):
    B, S = input_ids.shape

    # --- embeddings (table gathers are XLA glue feeding the fused kernel) ---
    word = jnp.take(params["word_emb"], input_ids, axis=0)        # (B, S, D)
    pos = params["pos_emb"][:S][None, :, :]                       # (1, S, D)
    ttype = params["type_emb"][0][None, None, :]                  # token_type_ids = 0
    emb = (word + pos + ttype).reshape(B * S, DIM)

    # --- combined additive attention bias (computed once, lives in VMEM for the whole kernel):
    #     -10000 on padded keys (HF semantics) and on cross-batch (query,key) pairs so all
    #     B*S rows can be attended in a single MXU pass per head. ---
    batch_of_row = jnp.arange(B * S, dtype=jnp.int32) // S
    same_batch = batch_of_row[:, None] == batch_of_row[None, :]
    key_valid = attention_mask.astype(bool).reshape(B * S)
    attn_bias = jnp.where(same_batch & key_valid[None, :], 0.0, -10000.0).astype(jnp.float32)

    h = bert_encoder(emb, attn_bias, params["emb_ln_g"], params["emb_ln_b"], params["enc"])

    last_hidden = h.reshape(B, S, DIM)
    # pooler_output of HF BertModel is unused by the reference forward's return -> skipped.
    cls = last_hidden[:, 0]                                       # (B, D)
    # Classification head (2x32x2 matmul): a dedicated kernel launch is 100% overhead -> XLA.
    logits = cls @ params["dense_w"] + params["dense_b"]          # (B, 2)
    return logits


# ----------------------------- main -----------------------------
if __name__ == "__main__":
    key = jax.random.PRNGKey(0)
    pkey, ikey = jax.random.split(key)

    params = init_params(pkey)
    input_ids = jax.random.randint(ikey, (BATCH, SEQ), 0, VOCAB, dtype=jnp.int32)
    attention_mask = jnp.array(
        [[1, 1, 1, 1, 1, 1, 1, 1],
         [1, 1, 1, 1, 1, 0, 0, 0]], dtype=jnp.int32
    )

    logits = jax.jit(bert_model_forward)(params, input_ids, attention_mask)
    logits = jax.block_until_ready(logits)
    assert logits.shape == (BATCH, NUM_LABELS) and logits.dtype == jnp.float32
    assert bool(jnp.all(jnp.isfinite(logits)))
    print("KERNEL_OK")
</pallas_src>

<mosaic_0001>
module attributes {stable_mosaic.version = 11 : i64} {
  func.func @_encoder_kernel(%arg0: i32, %arg1: memref<16x32xf32, #tpu.memory_space<vmem>>, %arg2: memref<16x16xf32, #tpu.memory_space<vmem>>, %arg3: memref<1x32xf32, #tpu.memory_space<vmem>>, %arg4: memref<1x32xf32, #tpu.memory_space<vmem>>, %arg5: memref<1x32x96xf32, #tpu.memory_space<vmem>>, %arg6: memref<1x1x96xf32, #tpu.memory_space<vmem>>, %arg7: memref<1x32x32xf32, #tpu.memory_space<vmem>>, %arg8: memref<1x1x32xf32, #tpu.memory_space<vmem>>, %arg9: memref<1x1x32xf32, #tpu.memory_space<vmem>>, %arg10: memref<1x1x32xf32, #tpu.memory_space<vmem>>, %arg11: memref<1x32x64xf32, #tpu.memory_space<vmem>>, %arg12: memref<1x1x64xf32, #tpu.memory_space<vmem>>, %arg13: memref<1x64x32xf32, #tpu.memory_space<vmem>>, %arg14: memref<1x1x32xf32, #tpu.memory_space<vmem>>, %arg15: memref<1x1x32xf32, #tpu.memory_space<vmem>>, %arg16: memref<1x1x32xf32, #tpu.memory_space<vmem>>, %arg17: memref<16x32xf32, #tpu.memory_space<vmem>>) attributes {dimension_semantics = [#tpu.dimension_semantics<arbitrary>], iteration_bounds = array<i64: 2>, scalar_prefetch = 0 : i64, scratch_operands = 0 : i64, tpu.core_type = #tpu.core_type<tc>, window_params = [{pipeline_mode = #tpu.pipeline_mode<synchronous>, transform_indices = @transform_0, window_bounds = array<i64: 16, 32>}, {pipeline_mode = #tpu.pipeline_mode<synchronous>, transform_indices = @transform_1, window_bounds = array<i64: 16, 16>}, {pipeline_mode = #tpu.pipeline_mode<synchronous>, transform_indices = @transform_2, window_bounds = array<i64: 1, 32>}, {pipeline_mode = #tpu.pipeline_mode<synchronous>, transform_indices = @transform_3, window_bounds = array<i64: 1, 32>}, {transform_indices = @transform_4, window_bounds = array<i64: 1, 32, 96>}, {transform_indices = @transform_5, window_bounds = array<i64: 1, 1, 96>}, {transform_indices = @transform_6, window_bounds = array<i64: 1, 32, 32>}, {transform_indices = @transform_7, window_bounds = array<i64: 1, 1, 32>}, {transform_indices = @transform_8, window_bounds = array<i64: 1, 1, 32>}, {transform_indices = @transform_9, window_bounds = array<i64: 1, 1, 32>}, {transform_indices = @transform_10, window_bounds = array<i64: 1, 32, 64>}, {transform_indices = @transform_11, window_bounds = array<i64: 1, 1, 64>}, {transform_indices = @transform_12, window_bounds = array<i64: 1, 64, 32>}, {transform_indices = @transform_13, window_bounds = array<i64: 1, 1, 32>}, {transform_indices = @transform_14, window_bounds = array<i64: 1, 1, 32>}, {transform_indices = @transform_15, window_bounds = array<i64: 1, 1, 32>}, {pipeline_mode = #tpu.pipeline_mode<synchronous>, transform_indices = @transform_16, window_bounds = array<i64: 16, 32>}]} {
    %c0_i32 = arith.constant 0 : i32
    %0 = arith.cmpi eq, %arg0, %c0_i32 : i32
    %1 = arith.extui %0 : i1 to i32
    %c0_i32_0 = arith.constant 0 : i32
    %2 = arith.cmpi ne, %1, %c0_i32_0 : i32
    scf.if %2 {
      %c0_81 = arith.constant 0 : index
      %c0_82 = arith.constant 0 : index
      %162 = vector.load %arg1[%c0_81, %c0_82] : memref<16x32xf32, #tpu.memory_space<vmem>>, vector<16x32xf32>
      %c0_83 = arith.constant 0 : index
      %c0_84 = arith.constant 0 : index
      %163 = vector.load %arg3[%c0_83, %c0_84] : memref<1x32xf32, #tpu.memory_space<vmem>>, vector<1x32xf32>
      %c0_85 = arith.constant 0 : index
      %c0_86 = arith.constant 0 : index
      %164 = vector.load %arg4[%c0_85, %c0_86] : memref<1x32xf32, #tpu.memory_space<vmem>>, vector<1x32xf32>
      %cst_87 = arith.constant dense<0.000000e+00> : vector<16xf32>
      %165 = vector.multi_reduction <add>, %162, %cst_87 [1] : vector<16x32xf32> to vector<16xf32>
      %166 = vector.shape_cast %165 : vector<16xf32> to vector<16x1xf32>
      %cst_88 = arith.constant 3.200000e+01 : f32
      %167 = vector.broadcast %cst_88 : f32 to vector<16x1xf32>
      %168 = arith.divf %166, %167 : vector<16x1xf32>
      %169 = vector.broadcast %168 : vector<16x1xf32> to vector<16x32xf32>
      %170 = arith.subf %162, %169 : vector<16x32xf32>
      %171 = arith.mulf %170, %170 : vector<16x32xf32>
      %cst_89 = arith.constant dense<0.000000e+00> : vector<16xf32>
      %172 = vector.multi_reduction <add>, %171, %cst_89 [1] : vector<16x32xf32> to vector<16xf32>
      %173 = vector.shape_cast %172 : vector<16xf32> to vector<16x1xf32>
      %cst_90 = arith.constant 3.200000e+01 : f32
      %174 = vector.broadcast %cst_90 : f32 to vector<16x1xf32>
      %175 = arith.divf %173, %174 : vector<16x1xf32>
      %cst_91 = arith.constant 9.99999996E-13 : f32
      %176 = vector.broadcast %cst_91 : f32 to vector<16x1xf32>
      %177 = arith.addf %175, %176 : vector<16x1xf32>
      %178 = math.rsqrt %177 : vector<16x1xf32>
      %179 = vector.broadcast %178 : vector<16x1xf32> to vector<16x32xf32>
      %180 = arith.mulf %170, %179 : vector<16x32xf32>
      %181 = vector.broadcast %163 : vector<1x32xf32> to vector<16x32xf32>
      %182 = arith.mulf %180, %181 : vector<16x32xf32>
      %183 = vector.broadcast %164 : vector<1x32xf32> to vector<16x32xf32>
      %184 = arith.addf %182, %183 : vector<16x32xf32>
      %c0_92 = arith.constant 0 : index
      %c0_93 = arith.constant 0 : index
      %185 = vector.load %arg17[%c0_92, %c0_93] : memref<16x32xf32, #tpu.memory_space<vmem>>, vector<16x32xf32>
      tpu.vector_store %arg17[%c0_92, %c0_93], %184 {strides = array<i32>} : memref<16x32xf32, #tpu.memory_space<vmem>>, vector<16x32xf32>,
    } else {
    }
    %c0 = arith.constant 0 : index
    %c0_1 = arith.constant 0 : index
    %3 = vector.load %arg17[%c0, %c0_1] : memref<16x32xf32, #tpu.memory_space<vmem>>, vector<16x32xf32>
    %c0_2 = arith.constant 0 : index
    %c0_3 = arith.constant 0 : index
    %4 = vector.load %arg2[%c0_2, %c0_3] : memref<16x16xf32, #tpu.memory_space<vmem>>, vector<16x16xf32>
    %c0_4 = arith.constant 0 : index
    %c0_5 = arith.constant 0 : index
    %c0_6 = arith.constant 0 : index
    %5 = vector.load %arg5[%c0_4, %c0_5, %c0_6] : memref<1x32x96xf32, #tpu.memory_space<vmem>>, vector<1x32x96xf32>
    %6 = vector.shape_cast %5 : vector<1x32x96xf32> to vector<32x96xf32>
    %cst = arith.constant dense<0.000000e+00> : vector<16x96xf32>
    %7 = tpu.matmul %3, %6, %cst {dimension_numbers = #tpu.dot_dimension_numbers<[1], [0], [0], [1], [0, 0, 1, 1], [], []>} : vector<16x32xf32>, vector<32x96xf32>, vector<16x96xf32> -> vector<16x96xf32>
    %c0_7 = arith.constant 0 : index
    %c0_8 = arith.constant 0 : index
    %c0_9 = arith.constant 0 : index
    %8 = vector.load %arg6[%c0_7, %c0_8, %c0_9] : memref<1x1x96xf32, #tpu.memory_space<vmem>>, vector<1x1x96xf32>
    %9 = vector.shape_cast %8 : vector<1x1x96xf32> to vector<1x96xf32>
    %10 = vector.broadcast %9 : vector<1x96xf32> to vector<16x96xf32>
    %11 = arith.addf %7, %10 : vector<16x96xf32>
    %12 = vector.extract_strided_slice %11 {offsets = [0, 0], sizes = [16, 16], strides = [1, 1]} : vector<16x96xf32> to vector<16x16xf32>
    %13 = vector.extract_strided_slice %11 {offsets = [0, 32], sizes = [16, 16], strides = [1, 1]} : vector<16x96xf32> to vector<16x16xf32>
    %14 = vector.extract_strided_slice %11 {offsets = [0, 64], sizes = [16, 16], strides = [1, 1]} : vector<16x96xf32> to vector<16x16xf32>
    %cst_10 = arith.constant dense<0.000000e+00> : vector<16x16xf32>
    %15 = tpu.matmul %12, %13, %cst_10 {dimension_numbers = #tpu.dot_dimension_numbers<[1], [1], [0], [0], [0, 0, 1, 0], [], []>} : vector<16x16xf32>, vector<16x16xf32>, vector<16x16xf32> -> vector<16x16xf32>
    %cst_11 = arith.constant 2.500000e-01 : f32
    %16 = vector.broadcast %cst_11 : f32 to vector<16x16xf32>
    %17 = arith.mulf %15, %16 : vector<16x16xf32>
    %18 = arith.addf %17, %4 : vector<16x16xf32>
    %cst_12 = arith.constant dense<0xFF800000> : vector<16xf32>
    %19 = vector.multi_reduction <maximumf>, %18, %cst_12 [1] : vector<16x16xf32> to vector<16xf32>
    %20 = vector.shape_cast %19 : vector<16xf32> to vector<16x1xf32>
    %21 = vector.broadcast %20 : vector<16x1xf32> to vector<16x16xf32>
    %22 = arith.subf %18, %21 : vector<16x16xf32>
    %23 = math.exp %22 : vector<16x16xf32>
    %cst_13 = arith.constant dense<0.000000e+00> : vector<16xf32>
    %24 = vector.multi_reduction <add>, %23, %cst_13 [1] : vector<16x16xf32> to vector<16xf32>
    %25 = vector.shape_cast %24 : vector<16xf32> to vector<16x1xf32>
    %26 = tpu.reciprocal %25 {approx = true} : vector<16x1xf32> -> vector<16x1xf32>
    %27 = vector.broadcast %26 : vector<16x1xf32> to vector<16x16xf32>
    %28 = arith.mulf %23, %27 : vector<16x16xf32>
    %cst_14 = arith.constant dense<0.000000e+00> : vector<16x16xf32>
    %29 = tpu.matmul %28, %14, %cst_14 {dimension_numbers = #tpu.dot_dimension_numbers<[1], [0], [0], [1], [0, 0, 1, 1], [], []>} : vector<16x16xf32>, vector<16x16xf32>, vector<16x16xf32> -> vector<16x16xf32>
    %30 = vector.extract_strided_slice %11 {offsets = [0, 16], sizes = [16, 16], strides = [1, 1]} : vector<16x96xf32> to vector<16x16xf32>
    %31 = vector.extract_strided_slice %11 {offsets = [0, 48], sizes = [16, 16], strides = [1, 1]} : vector<16x96xf32> to vector<16x16xf32>
    %32 = vector.extract_strided_slice %11 {offsets = [0, 80], sizes = [16, 16], strides = [1, 1]} : vector<16x96xf32> to vector<16x16xf32>
    %cst_15 = arith.constant dense<0.000000e+00> : vector<16x16xf32>
    %33 = tpu.matmul %30, %31, %cst_15 {dimension_numbers = #tpu.dot_dimension_numbers<[1], [1], [0], [0], [0, 0, 1, 0], [], []>} : vector<16x16xf32>, vector<16x16xf32>, vector<16x16xf32> -> vector<16x16xf32>
    %cst_16 = arith.constant 2.500000e-01 : f32
    %34 = vector.broadcast %cst_16 : f32 to vector<16x16xf32>
    %35 = arith.mulf %33, %34 : vector<16x16xf32>
    %36 = arith.addf %35, %4 : vector<16x16xf32>
    %cst_17 = arith.constant dense<0xFF800000> : vector<16xf32>
    %37 = vector.multi_reduction <maximumf>, %36, %cst_17 [1] : vector<16x16xf32> to vector<16xf32>
    %38 = vector.shape_cast %37 : vector<16xf32> to vector<16x1xf32>
    %39 = vector.broadcast %38 : vector<16x1xf32> to vector<16x16xf32>
    %40 = arith.subf %36, %39 : vector<16x16xf32>
    %41 = math.exp %40 : vector<16x16xf32>
    %cst_18 = arith.constant dense<0.000000e+00> : vector<16xf32>
    %42 = vector.multi_reduction <add>, %41, %cst_18 [1] : vector<16x16xf32> to vector<16xf32>
    %43 = vector.shape_cast %42 : vector<16xf32> to vector<16x1xf32>
    %44 = tpu.reciprocal %43 {approx = true} : vector<16x1xf32> -> vector<16x1xf32>
    %45 = vector.broadcast %44 : vector<16x1xf32> to vector<16x16xf32>
    %46 = arith.mulf %41, %45 : vector<16x16xf32>
    %cst_19 = arith.constant dense<0.000000e+00> : vector<16x16xf32>
    %47 = tpu.matmul %46, %32, %cst_19 {dimension_numbers = #tpu.dot_dimension_numbers<[1], [0], [0], [1], [0, 0, 1, 1], [], []>} : vector<16x16xf32>, vector<16x16xf32>, vector<16x16xf32> -> vector<16x16xf32>
    %48 = tpu.concatenate %29, %47 in 1 : vector<16x16xf32>, vector<16x16xf32> -> vector<16x32xf32>
    %c0_20 = arith.constant 0 : index
    %c0_21 = arith.constant 0 : index
    %c0_22 = arith.constant 0 : index
    %49 = vector.load %arg7[%c0_20, %c0_21, %c0_22] : memref<1x32x32xf32, #tpu.memory_space<vmem>>, vector<1x32x32xf32>
    %50 = vector.shape_cast %49 : vector<1x32x32xf32> to vector<32x32xf32>
    %cst_23 = arith.constant dense<0.000000e+00> : vector<16x32xf32>
    %51 = tpu.matmul %48, %50, %cst_23 {dimension_numbers = #tpu.dot_dimension_numbers<[1], [0], [0], [1], [0, 0, 1, 1], [], []>} : vector<16x32xf32>, vector<32x32xf32>, vector<16x32xf32> -> vector<16x32xf32>
    %c0_24 = arith.constant 0 : index
    %c0_25 = arith.constant 0 : index
    %c0_26 = arith.constant 0 : index
    %52 = vector.load %arg8[%c0_24, %c0_25, %c0_26] : memref<1x1x32xf32, #tpu.memory_space<vmem>>, vector<1x1x32xf32>
    %53 = vector.shape_cast %52 : vector<1x1x32xf32> to vector<1x32xf32>
    %54 = vector.broadcast %53 : vector<1x32xf32> to vector<16x32xf32>
    %55 = arith.addf %51, %54 : vector<16x32xf32>
    %56 = arith.addf %3, %55 : vector<16x32xf32>
    %c0_27 = arith.constant 0 : index
    %c0_28 = arith.constant 0 : index
    %c0_29 = arith.constant 0 : index
    %57 = vector.load %arg9[%c0_27, %c0_28, %c0_29] : memref<1x1x32xf32, #tpu.memory_space<vmem>>, vector<1x1x32xf32>
    %58 = vector.shape_cast %57 : vector<1x1x32xf32> to vector<1x32xf32>
    %c0_30 = arith.constant 0 : index
    %c0_31 = arith.constant 0 : index
    %c0_32 = arith.constant 0 : index
    %59 = vector.load %arg10[%c0_30, %c0_31, %c0_32] : memref<1x1x32xf32, #tpu.memory_space<vmem>>, vector<1x1x32xf32>
    %60 = vector.shape_cast %59 : vector<1x1x32xf32> to vector<1x32xf32>
    %cst_33 = arith.constant dense<0.000000e+00> : vector<16xf32>
    %61 = vector.multi_reduction <add>, %56, %cst_33 [1] : vector<16x32xf32> to vector<16xf32>
    %62 = vector.shape_cast %61 : vector<16xf32> to vector<16x1xf32>
    %cst_34 = arith.constant 3.200000e+01 : f32
    %63 = vector.broadcast %cst_34 : f32 to vector<16x1xf32>
    %64 = arith.divf %62, %63 : vector<16x1xf32>
    %65 = vector.broadcast %64 : vector<16x1xf32> to vector<16x32xf32>
    %66 = arith.subf %56, %65 : vector<16x32xf32>
    %67 = arith.mulf %66, %66 : vector<16x32xf32>
    %cst_35 = arith.constant dense<0.000000e+00> : vector<16xf32>
    %68 = vector.multi_reduction <add>, %67, %cst_35 [1] : vector<16x32xf32> to vector<16xf32>
    %69 = vector.shape_cast %68 : vector<16xf32> to vector<16x1xf32>
    %cst_36 = arith.constant 3.200000e+01 : f32
    %70 = vector.broadcast %cst_36 : f32 to vector<16x1xf32>
    %71 = arith.divf %69, %70 : vector<16x1xf32>
    %cst_37 = arith.constant 9.99999996E-13 : f32
    %72 = vector.broadcast %cst_37 : f32 to vector<16x1xf32>
    %73 = arith.addf %71, %72 : vector<16x1xf32>
    %74 = math.rsqrt %73 : vector<16x1xf32>
    %75 = vector.broadcast %74 : vector<16x1xf32> to vector<16x32xf32>
    %76 = arith.mulf %66, %75 : vector<16x32xf32>
    %77 = vector.broadcast %58 : vector<1x32xf32> to vector<16x32xf32>
    %78 = arith.mulf %76, %77 : vector<16x32xf32>
    %79 = vector.broadcast %60 : vector<1x32xf32> to vector<16x32xf32>
    %80 = arith.addf %78, %79 : vector<16x32xf32>
    %c0_38 = arith.constant 0 : index
    %c0_39 = arith.constant 0 : index
    %c0_40 = arith.constant 0 : index
    %81 = vector.load %arg11[%c0_38, %c0_39, %c0_40] : memref<1x32x64xf32, #tpu.memory_space<vmem>>, vector<1x32x64xf32>
    %82 = vector.shape_cast %81 : vector<1x32x64xf32> to vector<32x64xf32>
    %cst_41 = arith.constant dense<0.000000e+00> : vector<16x64xf32>
    %83 = tpu.matmul %80, %82, %cst_41 {dimension_numbers = #tpu.dot_dimension_numbers<[1], [0], [0], [1], [0, 0, 1, 1], [], []>} : vector<16x32xf32>, vector<32x64xf32>, vector<16x64xf32> -> vector<16x64xf32>
    %c0_42 = arith.constant 0 : index
    %c0_43 = arith.constant 0 : index
    %c0_44 = arith.constant 0 : index
    %84 = vector.load %arg12[%c0_42, %c0_43, %c0_44] : memref<1x1x64xf32, #tpu.memory_space<vmem>>, vector<1x1x64xf32>
    %85 = vector.shape_cast %84 : vector<1x1x64xf32> to vector<1x64xf32>
    %86 = vector.broadcast %85 : vector<1x64xf32> to vector<16x64xf32>
    %87 = arith.addf %83, %86 : vector<16x64xf32>
    %cst_45 = arith.constant 5.000000e-01 : f32
    %88 = vector.broadcast %cst_45 : f32 to vector<16x64xf32>
    %89 = arith.mulf %88, %87 : vector<16x64xf32>
    %cst_46 = arith.constant 0.707106769 : f32
    %90 = vector.broadcast %cst_46 : f32 to vector<16x64xf32>
    %91 = arith.mulf %87, %90 : vector<16x64xf32>
    %cst_47 = arith.constant 0.000000e+00 : f32
    %92 = vector.broadcast %cst_47 : f32 to vector<16x64xf32>
    %93 = arith.cmpf oge, %91, %92 : vector<16x64xf32>
    %cst_48 = arith.constant 1.000000e+00 : f32
    %cst_49 = arith.constant -1.000000e+00 : f32
    %94 = vector.broadcast %cst_48 : f32 to vector<16x64xf32>
    %95 = vector.broadcast %cst_49 : f32 to vector<16x64xf32>
    %96 = arith.select %93, %94, %95 : vector<16x64xi1>, vector<16x64xf32>
    %97 = math.absf %91 : vector<16x64xf32>
    %cst_50 = arith.constant 0.327591091 : f32
    %98 = vector.broadcast %cst_50 : f32 to vector<16x64xf32>
    %99 = arith.mulf %98, %97 : vector<16x64xf32>
    %cst_51 = arith.constant 1.000000e+00 : f32
    %100 = vector.broadcast %cst_51 : f32 to vector<16x64xf32>
    %101 = arith.addf %100, %99 : vector<16x64xf32>
    %cst_52 = arith.constant 1.000000e+00 : f32
    %102 = vector.broadcast %cst_52 : f32 to vector<16x64xf32>
    %103 = arith.divf %102, %101 : vector<16x64xf32>
    %cst_53 = arith.constant 1.06140542 : f32
    %104 = vector.broadcast %cst_53 : f32 to vector<16x64xf32>
    %105 = arith.mulf %104, %103 : vector<16x64xf32>
    %cst_54 = arith.constant -1.45315206 : f32
    %106 = vector.broadcast %cst_54 : f32 to vector<16x64xf32>
    %107 = arith.addf %105, %106 : vector<16x64xf32>
    %108 = arith.mulf %107, %103 : vector<16x64xf32>
    %cst_55 = arith.constant 1.42141378 : f32
    %109 = vector.broadcast %cst_55 : f32 to vector<16x64xf32>
    %110 = arith.addf %108, %109 : vector<16x64xf32>
    %111 = arith.mulf %110, %103 : vector<16x64xf32>
    %cst_56 = arith.constant -0.284496725 : f32
    %112 = vector.broadcast %cst_56 : f32 to vector<16x64xf32>
    %113 = arith.addf %111, %112 : vector<16x64xf32>
    %114 = arith.mulf %113, %103 : vector<16x64xf32>
    %cst_57 = arith.constant 0.254829586 : f32
    %115 = vector.broadcast %cst_57 : f32 to vector<16x64xf32>
    %116 = arith.addf %114, %115 : vector<16x64xf32>
    %117 = arith.mulf %116, %103 : vector<16x64xf32>
    %cst_58 = arith.constant 0.000000e+00 : f32
    %118 = vector.broadcast %cst_58 : f32 to vector<16x64xf32>
    %119 = arith.subf %118, %97 : vector<16x64xf32>
    %120 = arith.mulf %119, %97 : vector<16x64xf32>
    %121 = math.exp %120 : vector<16x64xf32>
    %122 = arith.mulf %117, %121 : vector<16x64xf32>
    %cst_59 = arith.constant 1.000000e+00 : f32
    %123 = vector.broadcast %cst_59 : f32 to vector<16x64xf32>
    %124 = arith.subf %123, %122 : vector<16x64xf32>
    %125 = arith.mulf %96, %124 : vector<16x64xf32>
    %cst_60 = arith.constant 1.000000e+00 : f32
    %126 = vector.broadcast %cst_60 : f32 to vector<16x64xf32>
    %127 = arith.addf %126, %125 : vector<16x64xf32>
    %128 = arith.mulf %89, %127 : vector<16x64xf32>
    %c0_61 = arith.constant 0 : index
    %c0_62 = arith.constant 0 : index
    %c0_63 = arith.constant 0 : index
    %129 = vector.load %arg13[%c0_61, %c0_62, %c0_63] : memref<1x64x32xf32, #tpu.memory_space<vmem>>, vector<1x64x32xf32>
    %130 = vector.shape_cast %129 : vector<1x64x32xf32> to vector<64x32xf32>
    %cst_64 = arith.constant dense<0.000000e+00> : vector<16x32xf32>
    %131 = tpu.matmul %128, %130, %cst_64 {dimension_numbers = #tpu.dot_dimension_numbers<[1], [0], [0], [1], [0, 0, 1, 1], [], []>} : vector<16x64xf32>, vector<64x32xf32>, vector<16x32xf32> -> vector<16x32xf32>
    %c0_65 = arith.constant 0 : index
    %c0_66 = arith.constant 0 : index
    %c0_67 = arith.constant 0 : index
    %132 = vector.load %arg14[%c0_65, %c0_66, %c0_67] : memref<1x1x32xf32, #tpu.memory_space<vmem>>, vector<1x1x32xf32>
    %133 = vector.shape_cast %132 : vector<1x1x32xf32> to vector<1x32xf32>
    %134 = vector.broadcast %133 : vector<1x32xf32> to vector<16x32xf32>
    %135 = arith.addf %131, %134 : vector<16x32xf32>
    %136 = arith.addf %80, %135 : vector<16x32xf32>
    %c0_68 = arith.constant 0 : index
    %c0_69 = arith.constant 0 : index
    %c0_70 = arith.constant 0 : index
    %137 = vector.load %arg15[%c0_68, %c0_69, %c0_70] : memref<1x1x32xf32, #tpu.memory_space<vmem>>, vector<1x1x32xf32>
    %138 = vector.shape_cast %137 : vector<1x1x32xf32> to vector<1x32xf32>
    %c0_71 = arith.constant 0 : index
    %c0_72 = arith.constant 0 : index
    %c0_73 = arith.constant 0 : index
    %139 = vector.load %arg16[%c0_71, %c0_72, %c0_73] : memref<1x1x32xf32, #tpu.memory_space<vmem>>, vector<1x1x32xf32>
    %140 = vector.shape_cast %139 : vector<1x1x32xf32> to vector<1x32xf32>
    %cst_74 = arith.constant dense<0.000000e+00> : vector<16xf32>
    %141 = vector.multi_reduction <add>, %136, %cst_74 [1] : vector<16x32xf32> to vector<16xf32>
    %142 = vector.shape_cast %141 : vector<16xf32> to vector<16x1xf32>
    %cst_75 = arith.constant 3.200000e+01 : f32
    %143 = vector.broadcast %cst_75 : f32 to vector<16x1xf32>
    %144 = arith.divf %142, %143 : vector<16x1xf32>
    %145 = vector.broadcast %144 : vector<16x1xf32> to vector<16x32xf32>
    %146 = arith.subf %136, %145 : vector<16x32xf32>
    %147 = arith.mulf %146, %146 : vector<16x32xf32>
    %cst_76 = arith.constant dense<0.000000e+00> : vector<16xf32>
    %148 = vector.multi_reduction <add>, %147, %cst_76 [1] : vector<16x32xf32> to vector<16xf32>
    %149 = vector.shape_cast %148 : vector<16xf32> to vector<16x1xf32>
    %cst_77 = arith.constant 3.200000e+01 : f32
    %150 = vector.broadcast %cst_77 : f32 to vector<16x1xf32>
    %151 = arith.divf %149, %150 : vector<16x1xf32>
    %cst_78 = arith.constant 9.99999996E-13 : f32
    %152 = vector.broadcast %cst_78 : f32 to vector<16x1xf32>
    %153 = arith.addf %151, %152 : vector<16x1xf32>
    %154 = math.rsqrt %153 : vector<16x1xf32>
    %155 = vector.broadcast %154 : vector<16x1xf32> to vector<16x32xf32>
    %156 = arith.mulf %146, %155 : vector<16x32xf32>
    %157 = vector.broadcast %138 : vector<1x32xf32> to vector<16x32xf32>
    %158 = arith.mulf %156, %157 : vector<16x32xf32>
    %159 = vector.broadcast %140 : vector<1x32xf32> to vector<16x32xf32>
    %160 = arith.addf %158, %159 : vector<16x32xf32>
    %c0_79 = arith.constant 0 : index
    %c0_80 = arith.constant 0 : index
    %161 = vector.load %arg17[%c0_79, %c0_80] : memref<16x32xf32, #tpu.memory_space<vmem>>, vector<16x32xf32>
    tpu.vector_store %arg17[%c0_79, %c0_80], %160 {strides = array<i32>} : memref<16x32xf32, #tpu.memory_space<vmem>>, vector<16x32xf32>,
    return
  }
  func.func @transform_0(%arg0: i32) -> (i32, i32) {
    %c0_i32 = arith.constant 0 : i32
    %c0_i32_0 = arith.constant 0 : i32
    %c0_i32_1 = arith.constant 0 : i32
    return %c0_i32, %c0_i32_0 : i32, i32
  }
  func.func @transform_1(%arg0: i32) -> (i32, i32) {
    %c0_i32 = arith.constant 0 : i32
    %c0_i32_0 = arith.constant 0 : i32
    %c0_i32_1 = arith.constant 0 : i32
    return %c0_i32, %c0_i32_0 : i32, i32
  }
  func.func @transform_2(%arg0: i32) -> (i32, i32) {
    %c0_i32 = arith.constant 0 : i32
    %c0_i32_0 = arith.constant 0 : i32
    %c0_i32_1 = arith.constant 0 : i32
    return %c0_i32, %c0_i32_0 : i32, i32
  }
  func.func @transform_3(%arg0: i32) -> (i32, i32) {
    %c0_i32 = arith.constant 0 : i32
    %c0_i32_0 = arith.constant 0 : i32
    %c0_i32_1 = arith.constant 0 : i32
    return %c0_i32, %c0_i32_0 : i32, i32
  }
  func.func @transform_4(%arg0: i32) -> (i32, i32, i32) {
    %c0_i32 = arith.constant 0 : i32
    %c0_i32_0 = arith.constant 0 : i32
    %c0_i32_1 = arith.constant 0 : i32
    return %arg0, %c0_i32, %c0_i32_0 : i32, i32, i32
  }
  func.func @transform_5(%arg0: i32) -> (i32, i32, i32) {
    %c0_i32 = arith.constant 0 : i32
    %c0_i32_0 = arith.constant 0 : i32
    %c0_i32_1 = arith.constant 0 : i32
    return %arg0, %c0_i32, %c0_i32_0 : i32, i32, i32
  }
  func.func @transform_6(%arg0: i32) -> (i32, i32, i32) {
    %c0_i32 = arith.constant 0 : i32
    %c0_i32_0 = arith.constant 0 : i32
    %c0_i32_1 = arith.constant 0 : i32
    return %arg0, %c0_i32, %c0_i32_0 : i32, i32, i32
  }
  func.func @transform_7(%arg0: i32) -> (i32, i32, i32) {
    %c0_i32 = arith.constant 0 : i32
    %c0_i32_0 = arith.constant 0 : i32
    %c0_i32_1 = arith.constant 0 : i32
    return %arg0, %c0_i32, %c0_i32_0 : i32, i32, i32
  }
  func.func @transform_8(%arg0: i32) -> (i32, i32, i32) {
    %c0_i32 = arith.constant 0 : i32
    %c0_i32_0 = arith.constant 0 : i32
    %c0_i32_1 = arith.constant 0 : i32
    return %arg0, %c0_i32, %c0_i32_0 : i32, i32, i32
  }
  func.func @transform_9(%arg0: i32) -> (i32, i32, i32) {
    %c0_i32 = arith.constant 0 : i32
    %c0_i32_0 = arith.constant 0 : i32
    %c0_i32_1 = arith.constant 0 : i32
    return %arg0, %c0_i32, %c0_i32_0 : i32, i32, i32
  }
  func.func @transform_10(%arg0: i32) -> (i32, i32, i32) {
    %c0_i32 = arith.constant 0 : i32
    %c0_i32_0 = arith.constant 0 : i32
    %c0_i32_1 = arith.constant 0 : i32
    return %arg0, %c0_i32, %c0_i32_0 : i32, i32, i32
  }
  func.func @transform_11(%arg0: i32) -> (i32, i32, i32) {
    %c0_i32 = arith.constant 0 : i32
    %c0_i32_0 = arith.constant 0 : i32
    %c0_i32_1 = arith.constant 0 : i32
    return %arg0, %c0_i32, %c0_i32_0 : i32, i32, i32
  }
  func.func @transform_12(%arg0: i32) -> (i32, i32, i32) {
    %c0_i32 = arith.constant 0 : i32
    %c0_i32_0 = arith.constant 0 : i32
    %c0_i32_1 = arith.constant 0 : i32
    return %arg0, %c0_i32, %c0_i32_0 : i32, i32, i32
  }
  func.func @transform_13(%arg0: i32) -> (i32, i32, i32) {
    %c0_i32 = arith.constant 0 : i32
    %c0_i32_0 = arith.constant 0 : i32
    %c0_i32_1 = arith.constant 0 : i32
    return %arg0, %c0_i32, %c0_i32_0 : i32, i32, i32
  }
  func.func @transform_14(%arg0: i32) -> (i32, i32, i32) {
    %c0_i32 = arith.constant 0 : i32
    %c0_i32_0 = arith.constant 0 : i32
    %c0_i32_1 = arith.constant 0 : i32
    return %arg0, %c0_i32, %c0_i32_0 : i32, i32, i32
  }
  func.func @transform_15(%arg0: i32) -> (i32, i32, i32) {
    %c0_i32 = arith.constant 0 : i32
    %c0_i32_0 = arith.constant 0 : i32
    %c0_i32_1 = arith.constant 0 : i32
    return %arg0, %c0_i32, %c0_i32_0 : i32, i32, i32
  }
  func.func @transform_16(%arg0: i32) -> (i32, i32) {
    %c0_i32 = arith.constant 0 : i32
    %c0_i32_0 = arith.constant 0 : i32
    %c0_i32_1 = arith.constant 0 : i32
    return %c0_i32, %c0_i32_0 : i32, i32
  }
}

</mosaic_0001>

<llo_original>
// kernel: bert_model_forward.1
$region0: #{bert_model_forward.1}
  #allocation0 [shape = 'u32[]', space=smem, size = 0x4, offset = 0x4, fixed_abs, tag = 'smem constant byte address 0x4 - core index']
  #allocation1 [shape = 'u32[72,128]{1,0:T(1,128)}', space=vmem, size = 0x9000, scoped, tag = 'internal scratch']
  %s0 = inlined_call_operand.vmem [shape: f32[16,32], index: 0, kind: input, shape index: {}]
  %s1 = inlined_call_operand.vmem [shape: f32[16,16], index: 1, kind: input, shape index: {}]
  %s2 = inlined_call_operand.vmem [shape: f32[1,32], index: 2, kind: input, shape index: {}]
  %s3 = inlined_call_operand.vmem [shape: f32[1,32], index: 3, kind: input, shape index: {}]
  %s4 = inlined_call_operand.vmem [shape: f32[2,32,96], index: 4, kind: input, shape index: {}]
  %s5 = inlined_call_operand.vmem [shape: f32[2,1,96], index: 5, kind: input, shape index: {}]
  %s6 = inlined_call_operand.vmem [shape: f32[2,32,32], index: 6, kind: input, shape index: {}]
  %s7 = inlined_call_operand.vmem [shape: f32[2,1,32], index: 7, kind: input, shape index: {}]
  %s8 = inlined_call_operand.vmem [shape: f32[2,1,32], index: 8, kind: input, shape index: {}]
  %s9 = inlined_call_operand.vmem [shape: f32[2,1,32], index: 9, kind: input, shape index: {}]
  %s10 = inlined_call_operand.vmem [shape: f32[2,32,64], index: 10, kind: input, shape index: {}]
  %s11 = inlined_call_operand.vmem [shape: f32[2,1,64], index: 11, kind: input, shape index: {}]
  %s12 = inlined_call_operand.vmem [shape: f32[2,64,32], index: 12, kind: input, shape index: {}]
  %s13 = inlined_call_operand.vmem [shape: f32[2,1,32], index: 13, kind: input, shape index: {}]
  %s14 = inlined_call_operand.vmem [shape: f32[2,1,32], index: 14, kind: input, shape index: {}]
  %s15 = inlined_call_operand.vmem [shape: f32[2,1,32], index: 15, kind: input, shape index: {}]
  %s16 = inlined_call_operand.vmem [shape: f32[16,32], index: 16, kind: output, shape index: {}]
  %s17 = sld [smem:[#allocation0]]
  $region101: #{bert_model_forward.1} parent=0
    _
  %s19 = ssub.s32 1, %s17
  %s20 = scalar_select 0, %s19, %s17
  loop: start=0, step=1, limit=4
  $region2: #{bert_model_forward.1} parent=0 // loop_pre_header
    _
  $region3: #{bert_model_forward.1} parent=0 // loop_header
    %s22 = sphi 0, %s26
    %p23 = scmp.ge.s32.totalorder %s22, 4
    %s30 = sphi 0, %s30
    %s32 = sphi 0, %s30
    %s33 = sphi 0, %s32
    %s47 = sphi 0, %s33
    %s51 = sphi 0, %s51
    %s53 = sphi 0, %s51
    %s54 = sphi 0, %s53
    %s68 = sphi 0, %s54
    %s72 = sphi 0, %s72
    %s74 = sphi 0, %s72
    %s75 = sphi 0, %s74
    %s89 = sphi 0, %s75
    %s93 = sphi 0, %s93
    %s95 = sphi 0, %s93
    %s96 = sphi 0, %s95
    %s110 = sphi 0, %s96
    %s116 = sphi 0, %s118
    %s119 = sphi 0, %s116
    %s120 = sphi 0, %s119
    %s136 = sphi 0, %s120
    %s142 = sphi 0, %s144
    %s145 = sphi 0, %s142
    %s146 = sphi 0, %s145
    %s162 = sphi 0, %s146
    %s168 = sphi 0, %s170
    %s171 = sphi 0, %s168
    %s172 = sphi 0, %s171
    %s188 = sphi 0, %s172
    %s194 = sphi 0, %s196
    %s197 = sphi 0, %s194
    %s198 = sphi 0, %s197
    %s214 = sphi 0, %s198
    %s220 = sphi 0, %s222
    %s223 = sphi 0, %s220
    %s224 = sphi 0, %s223
    %s240 = sphi 0, %s224
    %s246 = sphi 0, %s248
    %s249 = sphi 0, %s246
    %s250 = sphi 0, %s249
    %s266 = sphi 0, %s250
    %s272 = sphi 0, %s274
    %s275 = sphi 0, %s272
    %s276 = sphi 0, %s275
    %s292 = sphi 0, %s276
    %s298 = sphi 0, %s300
    %s301 = sphi 0, %s298
    %s302 = sphi 0, %s301
    %s318 = sphi 0, %s302
    %s324 = sphi 0, %s326
    %s327 = sphi 0, %s324
    %s328 = sphi 0, %s327
    %s344 = sphi 0, %s328
    %s350 = sphi 0, %s352
    %s353 = sphi 0, %s350
    %s354 = sphi 0, %s353
    %s370 = sphi 0, %s354
    %s376 = sphi 0, %s378
    %s379 = sphi 0, %s376
    %s380 = sphi 0, %s379
    %s396 = sphi 0, %s380
    %s402 = sphi 0, %s404
    %s405 = sphi 0, %s402
    %s406 = sphi 0, %s405
    %s422 = sphi 0, %s406
    %s426 = sphi 0, %s426
    %s428 = sphi 0, %s426
    %s429 = sphi 0, %s428
    %s443 = sphi 0, %s429
  $region4: #{bert_model_forward.1} parent=0 // loop_header_branch
    %25 = sbr.rel (%p23) target = $region8
  $region5: #{bert_model_forward.1} parent=0 // loop_body
    %s27 = ssub.s32 %s22, 1
    %s28 = ssub.s32 %s22, 2
    %s29 = sadd.s32 %s22, 1
    %s31 = sadd.s32 %s30, 1
    %p34 = scmp.eq.s32.totalorder %s22, 1
    %p35 = scmp.ne.s32.totalorder %s30, %s32
    %p36 = scmp.eq.s32.totalorder %s22, 0
    %p37 = por %p35, %p36
    %p38 = scmp.ne.s32.totalorder %s30, %s32
    %p39 = scmp.eq.s32.totalorder %s27, 1
    %p40 = por %p38, %p39
    %p41 = scmp.ne.s32.totalorder %s32, %s33
    %p42 = scmp.eq.s32.totalorder %s27, 0
    %p43 = por %p41, %p42
    %p44 = scmp.ne.s32.totalorder %s32, %s33
    %p45 = scmp.eq.s32.totalorder %s28, 1
    %p46 = por %p44, %p45
    %p48 = scmp.ne.s32.totalorder %s33, %s47
    %p49 = scmp.eq.s32.totalorder %s28, 0
    %p50 = por %p48, %p49
    %s52 = sadd.s32 %s51, 1
    %p55 = scmp.eq.s32.totalorder %s22, 1
    %p56 = scmp.ne.s32.totalorder %s51, %s53
    %p57 = scmp.eq.s32.totalorder %s22, 0
    %p58 = por %p56, %p57
    %p59 = scmp.ne.s32.totalorder %s51, %s53
    %p60 = scmp.eq.s32.totalorder %s27, 1
    %p61 = por %p59, %p60
    %p62 = scmp.ne.s32.totalorder %s53, %s54
    %p63 = scmp.eq.s32.totalorder %s27, 0
    %p64 = por %p62, %p63
    %p65 = scmp.ne.s32.totalorder %s53, %s54
    %p66 = scmp.eq.s32.totalorder %s28, 1
    %p67 = por %p65, %p66
    %p69 = scmp.ne.s32.totalorder %s54, %s68
    %p70 = scmp.eq.s32.totalorder %s28, 0
    %p71 = por %p69, %p70
    %s73 = sadd.s32 %s72, 1
    %p76 = scmp.eq.s32.totalorder %s22, 1
    %p77 = scmp.ne.s32.totalorder %s72, %s74
    %p78 = scmp.eq.s32.totalorder %s22, 0
    %p79 = por %p77, %p78
    %p80 = scmp.ne.s32.totalorder %s72, %s74
    %p81 = scmp.eq.s32.totalorder %s27, 1
    %p82 = por %p80, %p81
    %p83 = scmp.ne.s32.totalorder %s74, %s75
    %p84 = scmp.eq.s32.totalorder %s27, 0
    %p85 = por %p83, %p84
    %p86 = scmp.ne.s32.totalorder %s74, %s75
    %p87 = scmp.eq.s32.totalorder %s28, 1
    %p88 = por %p86, %p87
    %p90 = scmp.ne.s32.totalorder %s75, %s89
    %p91 = scmp.eq.s32.totalorder %s28, 0
    %p92 = por %p90, %p91
    %s94 = sadd.s32 %s93, 1
    %p97 = scmp.eq.s32.totalorder %s22, 1
    %p98 = scmp.ne.s32.totalorder %s93, %s95
    %p99 = scmp.eq.s32.totalorder %s22, 0
    %p100 = por %p98, %p99
    %p101 = scmp.ne.s32.totalorder %s93, %s95
    %p102 = scmp.eq.s32.totalorder %s27, 1
    %p103 = por %p101, %p102
    %p104 = scmp.ne.s32.totalorder %s95, %s96
    %p105 = scmp.eq.s32.totalorder %s27, 0
    %p106 = por %p104, %p105
    %p107 = scmp.ne.s32.totalorder %s95, %s96
    %p108 = scmp.eq.s32.totalorder %s28, 1
    %p109 = por %p107, %p108
    %p111 = scmp.ne.s32.totalorder %s96, %s110
    %p112 = scmp.eq.s32.totalorder %s28, 0
    %p113 = por %p111, %p112
    %s114 = ssub.s32 %s22, %s29
    %p115 = scmp.eq.s32.totalorder %s114, 0
    %s117 = sadd.s32 %s116, 1
    %s118 = scalar_select %p115, %s116, %s117
    %p121 = pneg %p115
    %p122 = scmp.eq.s32.totalorder %s22, 1
    %p123 = por %p121, %p122
    %p124 = scmp.ne.s32.totalorder %s116, %s119
    %p125 = scmp.eq.s32.totalorder %s22, 0
    %p126 = por %p124, %p125
    %p127 = scmp.ne.s32.totalorder %s116, %s119
    %p128 = scmp.eq.s32.totalorder %s27, 1
    %p129 = por %p127, %p128
    %p130 = scmp.ne.s32.totalorder %s119, %s120
    %p131 = scmp.eq.s32.totalorder %s27, 0
    %p132 = por %p130, %p131
    %p133 = scmp.ne.s32.totalorder %s119, %s120
    %p134 = scmp.eq.s32.totalorder %s28, 1
    %p135 = por %p133, %p134
    %p137 = scmp.ne.s32.totalorder %s120, %s136
    %p138 = scmp.eq.s32.totalorder %s28, 0
    %p139 = por %p137, %p138
    %s140 = ssub.s32 %s22, %s29
    %p141 = scmp.eq.s32.totalorder %s140, 0
    %s143 = sadd.s32 %s142, 1
    %s144 = scalar_select %p141, %s142, %s143
    %p147 = pneg %p141
    %p148 = scmp.eq.s32.totalorder %s22, 1
    %p149 = por %p147, %p148
    %p150 = scmp.ne.s32.totalorder %s142, %s145
    %p151 = scmp.eq.s32.totalorder %s22, 0
    %p152 = por %p150, %p151
    %p153 = scmp.ne.s32.totalorder %s142, %s145
    %p154 = scmp.eq.s32.totalorder %s27, 1
    %p155 = por %p153, %p154
    %p156 = scmp.ne.s32.totalorder %s145, %s146
    %p157 = scmp.eq.s32.totalorder %s27, 0
    %p158 = por %p156, %p157
    %p159 = scmp.ne.s32.totalorder %s145, %s146
    %p160 = scmp.eq.s32.totalorder %s28, 1
    %p161 = por %p159, %p160
    %p163 = scmp.ne.s32.totalorder %s146, %s162
    %p164 = scmp.eq.s32.totalorder %s28, 0
    %p165 = por %p163, %p164
    %s166 = ssub.s32 %s22, %s29
    %p167 = scmp.eq.s32.totalorder %s166, 0
    %s169 = sadd.s32 %s168, 1
    %s170 = scalar_select %p167, %s168, %s169
    %p173 = pneg %p167
    %p174 = scmp.eq.s32.totalorder %s22, 1
    %p175 = por %p173, %p174
    %p176 = scmp.ne.s32.totalorder %s168, %s171
    %p177 = scmp.eq.s32.totalorder %s22, 0
    %p178 = por %p176, %p177
    %p179 = scmp.ne.s32.totalorder %s168, %s171
    %p180 = scmp.eq.s32.totalorder %s27, 1
    %p181 = por %p179, %p180
    %p182 = scmp.ne.s32.totalorder %s171, %s172
    %p183 = scmp.eq.s32.totalorder %s27, 0
    %p184 = por %p182, %p183
    %p185 = scmp.ne.s32.totalorder %s171, %s172
    %p186 = scmp.eq.s32.totalorder %s28, 1
    %p187 = por %p185, %p186
    %p189 = scmp.ne.s32.totalorder %s172, %s188
    %p190 = scmp.eq.s32.totalorder %s28, 0
    %p191 = por %p189, %p190
    %s192 = ssub.s32 %s22, %s29
    %p193 = scmp.eq.s32.totalorder %s192, 0
    %s195 = sadd.s32 %s194, 1
    %s196 = scalar_select %p193, %s194, %s195
    %p199 = pneg %p193
    %p200 = scmp.eq.s32.totalorder %s22, 1
    %p201 = por %p199, %p200
    %p202 = scmp.ne.s32.totalorder %s194, %s197
    %p203 = scmp.eq.s32.totalorder %s22, 0
    %p204 = por %p202, %p203
    %p205 = scmp.ne.s32.totalorder %s194, %s197
    %p206 = scmp.eq.s32.totalorder %s27, 1
    %p207 = por %p205, %p206
    %p208 = scmp.ne.s32.totalorder %s197, %s198
    %p209 = scmp.eq.s32.totalorder %s27, 0
    %p210 = por %p208, %p209
    %p211 = scmp.ne.s32.totalorder %s197, %s198
    %p212 = scmp.eq.s32.totalorder %s28, 1
    %p213 = por %p211, %p212
    %p215 = scmp.ne.s32.totalorder %s198, %s214
    %p216 = scmp.eq.s32.totalorder %s28, 0
    %p217 = por %p215, %p216
    %s218 = ssub.s32 %s22, %s29
    %p219 = scmp.eq.s32.totalorder %s218, 0
    %s221 = sadd.s32 %s220, 1
    %s222 = scalar_select %p219, %s220, %s221
    %p225 = pneg %p219
    %p226 = scmp.eq.s32.totalorder %s22, 1
    %p227 = por %p225, %p226
    %p228 = scmp.ne.s32.totalorder %s220, %s223
    %p229 = scmp.eq.s32.totalorder %s22, 0
    %p230 = por %p228, %p229
    %p231 = scmp.ne.s32.totalorder %s220, %s223
    %p232 = scmp.eq.s32.totalorder %s27, 1
    %p233 = por %p231, %p232
    %p234 = scmp.ne.s32.totalorder %s223, %s224
    %p235 = scmp.eq.s32.totalorder %s27, 0
    %p236 = por %p234, %p235
    %p237 = scmp.ne.s32.totalorder %s223, %s224
    %p238 = scmp.eq.s32.totalorder %s28, 1
    %p239 = por %p237, %p238
    %p241 = scmp.ne.s32.totalorder %s224, %s240
    %p242 = scmp.eq.s32.totalorder %s28, 0
    %p243 = por %p241, %p242
    %s244 = ssub.s32 %s22, %s29
    %p245 = scmp.eq.s32.totalorder %s244, 0
    %s247 = sadd.s32 %s246, 1
    %s248 = scalar_select %p245, %s246, %s247
    %p251 = pneg %p245
    %p252 = scmp.eq.s32.totalorder %s22, 1
    %p253 = por %p251, %p252
    %p254 = scmp.ne.s32.totalorder %s246, %s249
    %p255 = scmp.eq.s32.totalorder %s22, 0
    %p256 = por %p254, %p255
    %p257 = scmp.ne.s32.totalorder %s246, %s249
    %p258 = scmp.eq.s32.totalorder %s27, 1
    %p259 = por %p257, %p258
    %p260 = scmp.ne.s32.totalorder %s249, %s250
    %p261 = scmp.eq.s32.totalorder %s27, 0
    %p262 = por %p260, %p261
    %p263 = scmp.ne.s32.totalorder %s249, %s250
    %p264 = scmp.eq.s32.totalorder %s28, 1
    %p265 = por %p263, %p264
    %p267 = scmp.ne.s32.totalorder %s250, %s266
    %p268 = scmp.eq.s32.totalorder %s28, 0
    %p269 = por %p267, %p268
    %s270 = ssub.s32 %s22, %s29
    %p271 = scmp.eq.s32.totalorder %s270, 0
    %s273 = sadd.s32 %s272, 1
    %s274 = scalar_select %p271, %s272, %s273
    %p277 = pneg %p271
    %p278 = scmp.eq.s32.totalorder %s22, 1
    %p279 = por %p277, %p278
    %p280 = scmp.ne.s32.totalorder %s272, %s275
    %p281 = scmp.eq.s32.totalorder %s22, 0
    %p282 = por %p280, %p281
    %p283 = scmp.ne.s32.totalorder %s272, %s275
    %p284 = scmp.eq.s32.totalorder %s27, 1
    %p285 = por %p283, %p284
    %p286 = scmp.ne.s32.totalorder %s275, %s276
    %p287 = scmp.eq.s32.totalorder %s27, 0
    %p288 = por %p286, %p287
    %p289 = scmp.ne.s32.totalorder %s275, %s276
    %p290 = scmp.eq.s32.totalorder %s28, 1
    %p291 = por %p289, %p290
    %p293 = scmp.ne.s32.totalorder %s276, %s292
    %p294 = scmp.eq.s32.totalorder %s28, 0
    %p295 = por %p293, %p294
    %s296 = ssub.s32 %s22, %s29
    %p297 = scmp.eq.s32.totalorder %s296, 0
    %s299 = sadd.s32 %s298, 1
    %s300 = scalar_select %p297, %s298, %s299
    %p303 = pneg %p297
    %p304 = scmp.eq.s32.totalorder %s22, 1
    %p305 = por %p303, %p304
    %p306 = scmp.ne.s32.totalorder %s298, %s301
    %p307 = scmp.eq.s32.totalorder %s22, 0
    %p308 = por %p306, %p307
    %p309 = scmp.ne.s32.totalorder %s298, %s301
    %p310 = scmp.eq.s32.totalorder %s27, 1
    %p311 = por %p309, %p310
    %p312 = scmp.ne.s32.totalorder %s301, %s302
    %p313 = scmp.eq.s32.totalorder %s27, 0
    %p314 = por %p312, %p313
    %p315 = scmp.ne.s32.totalorder %s301, %s302
    %p316 = scmp.eq.s32.totalorder %s28, 1
    %p317 = por %p315, %p316
    %p319 = scmp.ne.s32.totalorder %s302, %s318
    %p320 = scmp.eq.s32.totalorder %s28, 0
    %p321 = por %p319, %p320
    %s322 = ssub.s32 %s22, %s29
    %p323 = scmp.eq.s32.totalorder %s322, 0
    %s325 = sadd.s32 %s324, 1
    %s326 = scalar_select %p323, %s324, %s325
    %p329 = pneg %p323
    %p330 = scmp.eq.s32.totalorder %s22, 1
    %p331 = por %p329, %p330
    %p332 = scmp.ne.s32.totalorder %s324, %s327
    %p333 = scmp.eq.s32.totalorder %s22, 0
    %p334 = por %p332, %p333
    %p335 = scmp.ne.s32.totalorder %s324, %s327
    %p336 = scmp.eq.s32.totalorder %s27, 1
    %p337 = por %p335, %p336
    %p338 = scmp.ne.s32.totalorder %s327, %s328
    %p339 = scmp.eq.s32.totalorder %s27, 0
    %p340 = por %p338, %p339
    %p341 = scmp.ne.s32.totalorder %s327, %s328
    %p342 = scmp.eq.s32.totalorder %s28, 1
    %p343 = por %p341, %p342
    %p345 = scmp.ne.s32.totalorder %s328, %s344
    %p346 = scmp.eq.s32.totalorder %s28, 0
    %p347 = por %p345, %p346
    %s348 = ssub.s32 %s22, %s29
    %p349 = scmp.eq.s32.totalorder %s348, 0
    %s351 = sadd.s32 %s350, 1
    %s352 = scalar_select %p349, %s350, %s351
    %p355 = pneg %p349
    %p356 = scmp.eq.s32.totalorder %s22, 1
    %p357 = por %p355, %p356
    %p358 = scmp.ne.s32.totalorder %s350, %s353
    %p359 = scmp.eq.s32.totalorder %s22, 0
    %p360 = por %p358, %p359
    %p361 = scmp.ne.s32.totalorder %s350, %s353
    %p362 = scmp.eq.s32.totalorder %s27, 1
    %p363 = por %p361, %p362
    %p364 = scmp.ne.s32.totalorder %s353, %s354
    %p365 = scmp.eq.s32.totalorder %s27, 0
    %p366 = por %p364, %p365
    %p367 = scmp.ne.s32.totalorder %s353, %s354
    %p368 = scmp.eq.s32.totalorder %s28, 1
    %p369 = por %p367, %p368
    %p371 = scmp.ne.s32.totalorder %s354, %s370
    %p372 = scmp.eq.s32.totalorder %s28, 0
    %p373 = por %p371, %p372
    %s374 = ssub.s32 %s22, %s29
    %p375 = scmp.eq.s32.totalorder %s374, 0
    %s377 = sadd.s32 %s376, 1
    %s378 = scalar_select %p375, %s376, %s377
    %p381 = pneg %p375
    %p382 = scmp.eq.s32.totalorder %s22, 1
    %p383 = por %p381, %p382
    %p384 = scmp.ne.s32.totalorder %s376, %s379
    %p385 = scmp.eq.s32.totalorder %s22, 0
    %p386 = por %p384, %p385
    %p387 = scmp.ne.s32.totalorder %s376, %s379
    %p388 = scmp.eq.s32.totalorder %s27, 1
    %p389 = por %p387, %p388
    %p390 = scmp.ne.s32.totalorder %s379, %s380
    %p391 = scmp.eq.s32.totalorder %s27, 0
    %p392 = por %p390, %p391
    %p393 = scmp.ne.s32.totalorder %s379, %s380
    %p394 = scmp.eq.s32.totalorder %s28, 1
    %p395 = por %p393, %p394
    %p397 = scmp.ne.s32.totalorder %s380, %s396
    %p398 = scmp.eq.s32.totalorder %s28, 0
    %p399 = por %p397, %p398
    %s400 = ssub.s32 %s22, %s29
    %p401 = scmp.eq.s32.totalorder %s400, 0
    %s403 = sadd.s32 %s402, 1
    %s404 = scalar_select %p401, %s402, %s403
    %p407 = pneg %p401
    %p408 = scmp.eq.s32.totalorder %s22, 1
    %p409 = por %p407, %p408
    %p410 = scmp.ne.s32.totalorder %s402, %s405
    %p411 = scmp.eq.s32.totalorder %s22, 0
    %p412 = por %p410, %p411
    %p413 = scmp.ne.s32.totalorder %s402, %s405
    %p414 = scmp.eq.s32.totalorder %s27, 1
    %p415 = por %p413, %p414
    %p416 = scmp.ne.s32.totalorder %s405, %s406
    %p417 = scmp.eq.s32.totalorder %s27, 0
    %p418 = por %p416, %p417
    %p419 = scmp.ne.s32.totalorder %s405, %s406
    %p420 = scmp.eq.s32.totalorder %s28, 1
    %p421 = por %p419, %p420
    %p423 = scmp.ne.s32.totalorder %s406, %s422
    %p424 = scmp.eq.s32.totalorder %s28, 0
    %p425 = por %p423, %p424
    %s427 = sadd.s32 %s426, 1
    %p430 = scmp.eq.s32.totalorder %s22, 1
    %p431 = scmp.ne.s32.totalorder %s426, %s428
    %p432 = scmp.eq.s32.totalorder %s22, 0
    %p433 = por %p431, %p432
    %p434 = scmp.ne.s32.totalorder %s426, %s428
    %p435 = scmp.eq.s32.totalorder %s27, 1
    %p436 = por %p434, %p435
    %p437 = scmp.ne.s32.totalorder %s428, %s429
    %p438 = scmp.eq.s32.totalorder %s27, 0
    %p439 = por %p437, %p438
    %p440 = scmp.ne.s32.totalorder %s428, %s429
    %p441 = scmp.eq.s32.totalorder %s28, 1
    %p442 = por %p440, %p441
    %p444 = scmp.ne.s32.totalorder %s429, %s443
    %p445 = scmp.eq.s32.totalorder %s28, 0
    %p446 = por %p444, %p445
    %p447 = scmp.le.s32.totalorder 1, %s22
    %p448 = scmp.lt.s32.totalorder %s22, 3
    %p449 = pnand %p447, %p448
    %p450 = pneg %p449
    // Predicated region
    $region9: #{bert_model_forward.1} parent=5 // pred_check
      _
    $region10: #{bert_model_forward.1} parent=5 // pred_check_branch
      %452 = sbr.rel (%p449) target = $region12
    $region11: #{bert_model_forward.1} parent=5 // pred_region
      %s453 = ssub.s32 %s22, 1
      // Predicated region
      $region13: #{bert_model_forward.1} parent=11 // pred_check
        %p454 = pneg %p43
      $region14: #{bert_model_forward.1} parent=11 // pred_check_branch
        %456 = sbr.rel (%p454) target = $region16
      $region15: #{bert_model_forward.1} parent=11 // pred_region
        _
      $region16: #{bert_model_forward.1} parent=11 // pred_fallthru
        _
      // Predicated region
      $region17: #{bert_model_forward.1} parent=11 // pred_check
        %p457 = pneg %p64
      $region18: #{bert_model_forward.1} parent=11 // pred_check_branch
        %459 = sbr.rel (%p457) target = $region20
      $region19: #{bert_model_forward.1} parent=11 // pred_region
        _
      $region20: #{bert_model_forward.1} parent=11 // pred_fallthru
        _
      // Predicated region
      $region21: #{bert_model_forward.1} parent=11 // pred_check
        %p460 = pneg %p85
      $region22: #{bert_model_forward.1} parent=11 // pred_check_branch
        %462 = sbr.rel (%p460) target = $region24
      $region23: #{bert_model_forward.1} parent=11 // pred_region
        _
      $region24: #{bert_model_forward.1} parent=11 // pred_fallthru
        _
      // Predicated region
      $region25: #{bert_model_forward.1} parent=11 // pred_check
        %p463 = pneg %p106
      $region26: #{bert_model_forward.1} parent=11 // pred_check_branch
        %465 = sbr.rel (%p463) target = $region28
      $region27: #{bert_model_forward.1} parent=11 // pred_region
        _
      $region28: #{bert_model_forward.1} parent=11 // pred_fallthru
        _
    $region12: #{bert_model_forward.1} parent=5 // pred_fallthru
      _
    %p466 = scmp.lt.s32.totalorder %s22, 2
    // Predicated region
    $region29: #{bert_model_forward.1} parent=5 // pred_check
      %p467 = pneg %p466
    $region30: #{bert_model_forward.1} parent=5 // pred_check_branch
      %469 = sbr.rel (%p467) target = $region32
    $region31: #{bert_model_forward.1} parent=5 // pred_region
      // Predicated region
      $region33: #{bert_model_forward.1} parent=31 // pred_check
        %p470 = pneg %p126
      $region34: #{bert_model_forward.1} parent=31 // pred_check_branch
        %472 = sbr.rel (%p470) target = $region36
      $region35: #{bert_model_forward.1} parent=31 // pred_region
        %p473 = scmp.lt.s32.totalorder %s22, 1
        %s474 = scalar_select %p473, %s22, 1
        %s475 = smul.addr %s474, 4
        %s476 = smul.addr %s475, 8
        %s477 = scalar_lea.vmem %s4, %s476
      $region36: #{bert_model_forward.1} parent=31 // pred_fallthru
        _
      // Predicated region
      $region37: #{bert_model_forward.1} parent=31 // pred_check
        %p478 = pneg %p152
      $region38: #{bert_model_forward.1} parent=31 // pred_check_branch
        %480 = sbr.rel (%p478) target = $region40
      $region39: #{bert_model_forward.1} parent=31 // pred_region
        %p481 = scmp.lt.s32.totalorder %s22, 1
        %s482 = scalar_select %p481, %s22, 1
        %s483 = scalar_lea.vmem %s5, %s482
      $region40: #{bert_model_forward.1} parent=31 // pred_fallthru
        _
      // Predicated region
      $region41: #{bert_model_forward.1} parent=31 // pred_check
        %p484 = pneg %p178
      $region42: #{bert_model_forward.1} parent=31 // pred_check_branch
        %486 = sbr.rel (%p484) target = $region44
      $region43: #{bert_model_forward.1} parent=31 // pred_region
        %p487 = scmp.lt.s32.totalorder %s22, 1
        %s488 = scalar_select %p487, %s22, 1
        %s489 = smul.addr %s488, 4
        %s490 = smul.addr %s489, 8
        %s491 = scalar_lea.vmem %s6, %s490
      $region44: #{bert_model_forward.1} parent=31 // pred_fallthru
        _
      // Predicated region
      $region45: #{bert_model_forward.1} parent=31 // pred_check
        %p492 = pneg %p204
      $region46: #{bert_model_forward.1} parent=31 // pred_check_branch
        %494 = sbr.rel (%p492) target = $region48
      $region47: #{bert_model_forward.1} parent=31 // pred_region
        %p495 = scmp.lt.s32.totalorder %s22, 1
        %s496 = scalar_select %p495, %s22, 1
        %s497 = scalar_lea.vmem %s7, %s496
      $region48: #{bert_model_forward.1} parent=31 // pred_fallthru
        _
      // Predicated region
      $region49: #{bert_model_forward.1} parent=31 // pred_check
        %p498 = pneg %p230
      $region50: #{bert_model_forward.1} parent=31 // pred_check_branch
        %500 = sbr.rel (%p498) target = $region52
      $region51: #{bert_model_forward.1} parent=31 // pred_region
        %p501 = scmp.lt.s32.totalorder %s22, 1
        %s502 = scalar_select %p501, %s22, 1
        %s503 = scalar_lea.vmem %s8, %s502
      $region52: #{bert_model_forward.1} parent=31 // pred_fallthru
        _
      // Predicated region
      $region53: #{bert_model_forward.1} parent=31 // pred_check
        %p504 = pneg %p256
      $region54: #{bert_model_forward.1} parent=31 // pred_check_branch
        %506 = sbr.rel (%p504) target = $region56
      $region55: #{bert_model_forward.1} parent=31 // pred_region
        %p507 = scmp.lt.s32.totalorder %s22, 1
        %s508 = scalar_select %p507, %s22, 1
        %s509 = scalar_lea.vmem %s9, %s508
      $region56: #{bert_model_forward.1} parent=31 // pred_fallthru
        _
      // Predicated region
      $region57: #{bert_model_forward.1} parent=31 // pred_check
        %p510 = pneg %p282
      $region58: #{bert_model_forward.1} parent=31 // pred_check_branch
        %512 = sbr.rel (%p510) target = $region60
      $region59: #{bert_model_forward.1} parent=31 // pred_region
        %p513 = scmp.lt.s32.totalorder %s22, 1
        %s514 = scalar_select %p513, %s22, 1
        %s515 = smul.addr %s514, 4
        %s516 = smul.addr %s515, 8
        %s517 = scalar_lea.vmem %s10, %s516
      $region60: #{bert_model_forward.1} parent=31 // pred_fallthru
        _
      // Predicated region
      $region61: #{bert_model_forward.1} parent=31 // pred_check
        %p518 = pneg %p308
      $region62: #{bert_model_forward.1} parent=31 // pred_check_branch
        %520 = sbr.rel (%p518) target = $region64
      $region63: #{bert_model_forward.1} parent=31 // pred_region
        %p521 = scmp.lt.s32.totalorder %s22, 1
        %s522 = scalar_select %p521, %s22, 1
        %s523 = scalar_lea.vmem %s11, %s522
      $region64: #{bert_model_forward.1} parent=31 // pred_fallthru
        _
      // Predicated region
      $region65: #{bert_model_forward.1} parent=31 // pred_check
        %p524 = pneg %p334
      $region66: #{bert_model_forward.1} parent=31 // pred_check_branch
        %526 = sbr.rel (%p524) target = $region68
      $region67: #{bert_model_forward.1} parent=31 // pred_region
        %p527 = scmp.lt.s32.totalorder %s22, 1
        %s528 = scalar_select %p527, %s22, 1
        %s529 = smul.addr %s528, 8
        %s530 = smul.addr %s529, 8
        %s531 = scalar_lea.vmem %s12, %s530
      $region68: #{bert_model_forward.1} parent=31 // pred_fallthru
        _
      // Predicated region
      $region69: #{bert_model_forward.1} parent=31 // pred_check
        %p532 = pneg %p360
      $region70: #{bert_model_forward.1} parent=31 // pred_check_branch
        %534 = sbr.rel (%p532) target = $region72
      $region71: #{bert_model_forward.1} parent=31 // pred_region
        %p535 = scmp.lt.s32.totalorder %s22, 1
        %s536 = scalar_select %p535, %s22, 1
        %s537 = scalar_lea.vmem %s13, %s536
      $region72: #{bert_model_forward.1} parent=31 // pred_fallthru
        _
      // Predicated region
      $region73: #{bert_model_forward.1} parent=31 // pred_check
        %p538 = pneg %p386
      $region74: #{bert_model_forward.1} parent=31 // pred_check_branch
        %540 = sbr.rel (%p538) target = $region76
      $region75: #{bert_model_forward.1} parent=31 // pred_region
        %p541 = scmp.lt.s32.totalorder %s22, 1
        %s542 = scalar_select %p541, %s22, 1
        %s543 = scalar_lea.vmem %s14, %s542
      $region76: #{bert_model_forward.1} parent=31 // pred_fallthru
        _
      // Predicated region
      $region77: #{bert_model_forward.1} parent=31 // pred_check
        %p544 = pneg %p412
      $region78: #{bert_model_forward.1} parent=31 // pred_check_branch
        %546 = sbr.rel (%p544) target = $region80
      $region79: #{bert_model_forward.1} parent=31 // pred_region
        %p547 = scmp.lt.s32.totalorder %s22, 1
        %s548 = scalar_select %p547, %s22, 1
        %s549 = scalar_lea.vmem %s15, %s548
      $region80: #{bert_model_forward.1} parent=31 // pred_fallthru
        _
    $region32: #{bert_model_forward.1} parent=5 // pred_fallthru
      _
    %p550 = scmp.le.s32.totalorder 1, %s22
    %p551 = scmp.lt.s32.totalorder %s22, 3
    %p552 = pnand %p550, %p551
    %p553 = pneg %p552
    // Predicated region
    $region81: #{bert_model_forward.1} parent=5 // pred_check
      _
    $region82: #{bert_model_forward.1} parent=5 // pred_check_branch
      %555 = sbr.rel (%p552) target = $region84
    $region83: #{bert_model_forward.1} parent=5 // pred_region
      %s556 = ssub.s32 %s22, 1
      %p557 = pneg %p43
      %p558 = pneg %p40
      %p559 = pneg %p64
      %p560 = pneg %p61
      %p561 = pneg %p85
      %p562 = pneg %p82
      %p563 = pneg %p106
      %p564 = pneg %p103
      %p565 = scmp.lt.s32.totalorder %s27, 1
      %s566 = scalar_select %p565, %s27, 1
      %s567 = smul.addr %s566, 4
      %s568 = smul.addr %s567, 8
      %s569 = scalar_lea.vmem %s4, %s568
      %p570 = pneg %p132
      %p571 = pneg %p129
      %p572 = scmp.lt.s32.totalorder %s27, 1
      %s573 = scalar_select %p572, %s27, 1
      %s574 = scalar_lea.vmem %s5, %s573
      %p575 = pneg %p158
      %p576 = pneg %p155
      %p577 = scmp.lt.s32.totalorder %s27, 1
      %s578 = scalar_select %p577, %s27, 1
      %s579 = smul.addr %s578, 4
      %s580 = smul.addr %s579, 8
      %s581 = scalar_lea.vmem %s6, %s580
      %p582 = pneg %p184
      %p583 = pneg %p181
      %p584 = scmp.lt.s32.totalorder %s27, 1
      %s585 = scalar_select %p584, %s27, 1
      %s586 = scalar_lea.vmem %s7, %s585
      %p587 = pneg %p210
      %p588 = pneg %p207
      %p589 = scmp.lt.s32.totalorder %s27, 1
      %s590 = scalar_select %p589, %s27, 1
      %s591 = scalar_lea.vmem %s8, %s590
      %p592 = pneg %p236
      %p593 = pneg %p233
      %p594 = scmp.lt.s32.totalorder %s27, 1
      %s595 = scalar_select %p594, %s27, 1
      %s596 = scalar_lea.vmem %s9, %s595
      %p597 = pneg %p262
      %p598 = pneg %p259
      %p599 = scmp.lt.s32.totalorder %s27, 1
      %s600 = scalar_select %p599, %s27, 1
      %s601 = smul.addr %s600, 4
      %s602 = smul.addr %s601, 8
      %s603 = scalar_lea.vmem %s10, %s602
      %p604 = pneg %p288
      %p605 = pneg %p285
      %p606 = scmp.lt.s32.totalorder %s27, 1
      %s607 = scalar_select %p606, %s27, 1
      %s608 = scalar_lea.vmem %s11, %s607
      %p609 = pneg %p314
      %p610 = pneg %p311
      %p611 = scmp.lt.s32.totalorder %s27, 1
      %s612 = scalar_select %p611, %s27, 1
      %s613 = smul.addr %s612, 8
      %s614 = smul.addr %s613, 8
      %s615 = scalar_lea.vmem %s12, %s614
      %p616 = pneg %p340
      %p617 = pneg %p337
      %p618 = scmp.lt.s32.totalorder %s27, 1
      %s619 = scalar_select %p618, %s27, 1
      %s620 = scalar_lea.vmem %s13, %s619
      %p621 = pneg %p366
      %p622 = pneg %p363
      %p623 = scmp.lt.s32.totalorder %s27, 1
      %s624 = scalar_select %p623, %s27, 1
      %s625 = scalar_lea.vmem %s14, %s624
      %p626 = pneg %p392
      %p627 = pneg %p389
      %p628 = scmp.lt.s32.totalorder %s27, 1
      %s629 = scalar_select %p628, %s27, 1
      %s630 = scalar_lea.vmem %s15, %s629
      %p631 = pneg %p418
      %p632 = pneg %p415
      %p633 = pneg %p439
      %p634 = pneg %p436
      %p635 = scmp.lt.s32.totalorder %s27, 1
      %s636 = scalar_select %p635, %s27, 1
      %s637 = smul.addr %s636, 4
      %s638 = smul.addr %s637, 8
      %s639 = scalar_lea.vmem %s4, %s638
      %p640 = scmp.lt.s32.totalorder %s27, 1
      %s641 = scalar_select %p640, %s27, 1
      %s642 = scalar_lea.vmem %s5, %s641
      %p643 = scmp.lt.s32.totalorder %s27, 1
      %s644 = scalar_select %p643, %s27, 1
      %s645 = smul.addr %s644, 4
      %s646 = smul.addr %s645, 8
      %s647 = scalar_lea.vmem %s6, %s646
      %p648 = scmp.lt.s32.totalorder %s27, 1
      %s649 = scalar_select %p648, %s27, 1
      %s650 = scalar_lea.vmem %s7, %s649
      %p651 = scmp.lt.s32.totalorder %s27, 1
      %s652 = scalar_select %p651, %s27, 1
      %s653 = scalar_lea.vmem %s8, %s652
      %p654 = scmp.lt.s32.totalorder %s27, 1
      %s655 = scalar_select %p654, %s27, 1
      %s656 = scalar_lea.vmem %s9, %s655
      %p657 = scmp.lt.s32.totalorder %s27, 1
      %s658 = scalar_select %p657, %s27, 1
      %s659 = smul.addr %s658, 4
      %s660 = smul.addr %s659, 8
      %s661 = scalar_lea.vmem %s10, %s660
      %p662 = scmp.lt.s32.totalorder %s27, 1
      %s663 = scalar_select %p662, %s27, 1
      %s664 = scalar_lea.vmem %s11, %s663
      %p665 = scmp.lt.s32.totalorder %s27, 1
      %s666 = scalar_select %p665, %s27, 1
      %s667 = smul.addr %s666, 8
      %s668 = smul.addr %s667, 8
      %s669 = scalar_lea.vmem %s12, %s668
      %p670 = scmp.lt.s32.totalorder %s27, 1
      %s671 = scalar_select %p670, %s27, 1
      %s672 = scalar_lea.vmem %s13, %s671
      %p673 = scmp.lt.s32.totalorder %s27, 1
      %s674 = scalar_select %p673, %s27, 1
      %s675 = scalar_lea.vmem %s14, %s674
      %p676 = scmp.lt.s32.totalorder %s27, 1
      %s677 = scalar_select %p676, %s27, 1
      %s678 = scalar_lea.vmem %s15, %s677
      %p679 = scmp.eq.s32.totalorder %s27, 0
      // Predicated region
      $region85: #{bert_model_forward.1} parent=83 // pred_check
        %p680 = pneg %p679
      $region86: #{bert_model_forward.1} parent=83 // pred_check_branch
        %682 = sbr.rel (%p680) target = $region88
      $region87: #{bert_model_forward.1} parent=83 // pred_region
        %v683 = vld [vmem:[%s0] sm:$0xff]
        %v684 = vld [vmem:[%s0 + $0x8] sm:$0xff]
        %v685 = vld [vmem:[%s2] sm:$0x1]
        %v686 = vld [vmem:[%s3] sm:$0x1]
        %vm687 = vcmask 261120
        %v688 = vsel %vm687, %v683, 0.0
        %689 = vadd.xlane.f32.xlu0 %v688
        %v690 = vpop.xlane.xlu0 %689
        %v691 = vsel %vm687, %v684, 0.0
        %692 = vadd.xlane.f32.xlu0 %v691
        %v693 = vpop.xlane.xlu0 %692
        %v694 = vrcp.pop 32.0
        %v695 = vmul.f32 32.0, %v694
        %v696 = vsub.f32 1.0, %v695
        %v697 = vmul.f32 %v694, %v696
        %v698 = vadd.f32 %v694, %v697
        %vm699 = vweird.f32 %v694
        %v700 = vsel %vm699, %v694, %v698
        %v701 = vmul.f32 %v690, %v700
        %v702 = vmul.f32 %v693, %v700
        %v703 = vsub.f32 %v683, %v701
        %v704 = vsub.f32 %v684, %v702
        %v705 = vmul.f32 %v703, %v703
        %v706 = vmul.f32 %v704, %v704
        %v707 = vsel %vm687, %v705, 0.0
        %708 = vadd.xlane.f32.xlu0 %v707
        %v709 = vpop.xlane.xlu0 %708
        %v710 = vsel %vm687, %v706, 0.0
        %711 = vadd.xlane.f32.xlu0 %v710
        %v712 = vpop.xlane.xlu0 %711
        %v713 = vmul.f32 %v709, %v700
        %v714 = vmul.f32 %v712, %v700
        %v715 = vadd.f32 %v713, 1e-12
        %v716 = vadd.f32 %v714, 1e-12
        %v717 = vrsqrt.pop %v715
        %v718 = vmul.f32 %v717, %v715
        %v719 = vmul.f32 %v718, %v717
        %v720 = vmul.f32 0.5, %v719
        %v721 = vsub.f32 1.5, %v720
        %v722 = vmul.f32 %v717, %v721
        %vm723 = vweird.f32 %v715
        %vm724 = vweird.f32 %v717
        %vm725 = vmor %vm723, %vm724
        %v726 = vsel %vm725, %v717, %v722
        %v727 = vrsqrt.pop %v716
        %v728 = vmul.f32 %v727, %v716
        %v729 = vmul.f32 %v728, %v727
        %v730 = vmul.f32 0.5, %v729
        %v731 = vsub.f32 1.5, %v730
        %v732 = vmul.f32 %v727, %v731
        %vm733 = vweird.f32 %v716
        %vm734 = vweird.f32 %v727
        %vm735 = vmor %vm733, %vm734
        %v736 = vsel %vm735, %v727, %v732
        %v737 = vmul.f32 %v703, %v726
        %v738 = vmul.f32 %v704, %v736
        %v740 = vperm.slane %v685, 0
        %v742 = vmul.f32 %v737, %v740
        %v743 = vmul.f32 %v738, %v740
        %v745 = vperm.slane %v686, 0
        %v747 = vadd.f32 %v742, %v745
        %v748 = vadd.f32 %v743, %v745
        %749 = vst.msk [vmem:[%s16] sm:$0xff] %vm687, %v747
        %750 = vst.msk [vmem:[%s16 + $0x8] sm:$0xff] %vm687, %v748
      $region88: #{bert_model_forward.1} parent=83 // pred_fallthru
        _
      %v751 = vld [vmem:[%s16] sm:$0xff]
      %v752 = vld [vmem:[%s16 + $0x8] sm:$0xff]
      %v753 = vld [vmem:[%s1] sm:$0xff]
      %v754 = vld [vmem:[%s1 + $0x8] sm:$0xff]
      %v755 = vld [vmem:[%s639] sm:$0xff]
      %v756 = vld [vmem:[%s639 + $0x8] sm:$0xff]
      %v757 = vld [vmem:[%s639 + $0x10] sm:$0xff]
      %v758 = vld [vmem:[%s639 + $0x18] sm:$0xff]
      %v759 = vld [vmem:[%s642] sm:$0x1]
      %v761 = vperm.slane %v759, 0
      %vm763 = vcmask 261120
      %v765 = vsel %vm763, %v751, 0
      %v768 = vsel %vm763, %v752, 0
      %770 = vmatpush.msra.mxu0 0.0
      %771 = vmatpush.msra.mxu0 0.0
      %772 = vmatpush.msra.mxu0 0.0
      %773 = vmatpush.msra.mxu0 0.0
      %774 = vmatpush.msra.mxu0 0.0
      %775 = vmatpush.msra.mxu0 0.0
      %776 = vmatpush.msra.mxu0 0.0
      %777 = vmatpush.msra.mxu0 0.0
      %778 = vmatpush.msra.mxu0 0.0
      %779 = vmatpush.msra.mxu0 0.0
      %780 = vmatpush.msra.mxu0 0.0
      %781 = vmatpush.msra.mxu0 0.0
      %782 = vmatpush.msra.mxu0 %v758
      %783 = vmatpush.msra.mxu0 %v757
      %784 = vmatpush.msra.mxu0 %v756
      %785 = vmatpush.msra.mxu0 %v755
      %786 = vmatmul.f32.gmra.mxu0 %v765
      %v787 = vpop.f32.mrf.mxu0
      %v788 = vadd.f32 %v761, %v787
      %789 = vmatmul.f32.gmra.mxu0 %v768
      %v790 = vpop.f32.mrf.mxu0
      %v791 = vadd.f32 %v761, %v790
      %792 = vdwg.mxu0
      %795 = vrot.lane.b32.xlu0 %v788, 96
      %v796 = vpop.permute.xlu0 %795
      %797 = vrot.lane.b32.xlu0 %v791, 96
      %v798 = vpop.permute.xlu0 %797
      %vm799 = vcmask 130048
      %v800 = vsel %vm799, %v788, 0
      %v802 = vsel %vm799, %v791, 0
      %v804 = vsel %vm799, %v796, 0
      %v806 = vsel %vm799, %v798, 0
      %808 = vmatpush.xpose.msra.mxu0 0.0
      %809 = vmatpush.xpose.msra.mxu0 0.0
      %810 = vmatpush.xpose.msra.mxu0 0.0
      %811 = vmatpush.xpose.msra.mxu0 0.0
      %812 = vmatpush.xpose.msra.mxu0 0.0
      %813 = vmatpush.xpose.msra.mxu0 0.0
      %814 = vmatpush.xpose.msra.mxu0 0.0
      %815 = vmatpush.xpose.msra.mxu0 0.0
      %816 = vmatpush.xpose.msra.mxu0 0.0
      %817 = vmatpush.xpose.msra.mxu0 0.0
      %818 = vmatpush.xpose.msra.mxu0 0.0
      %819 = vmatpush.xpose.msra.mxu0 0.0
      %820 = vmatpush.xpose.msra.mxu0 0.0
      %821 = vmatpush.xpose.msra.mxu0 0.0
      %822 = vmatpush.xpose.msra.mxu0 %v806
      %823 = vmatpush.xpose.msra.mxu0 %v804
      %824 = vmatmul.f32.gmra.mxu0 %v800
      %v825 = vpop.f32.mrf.mxu0
      %v826 = vadd.f32 0.0, %v825
      %827 = vmatmul.f32.gmra.mxu0 %v802
      %v828 = vpop.f32.mrf.mxu0
      %v829 = vadd.f32 0.0, %v828
      %830 = vdwg.mxu0
      %v831 = vmul.f32 %v826, 0.25
      %v832 = vmul.f32 %v829, 0.25
      %v833 = vadd.f32 %v831, %v753
      %v834 = vadd.f32 %v832, %v754
      %v835 = vsel %vm799, %v833, -inf
      %836 = vmax.xlane.f32.xlu0 %v835
      %v837 = vpop.xlane.xlu0 %836
      %v838 = vsel %vm799, %v834, -inf
      %839 = vmax.xlane.f32.xlu0 %v838
      %v840 = vpop.xlane.xlu0 %839
      %v841 = vsub.f32 %v833, %v837
      %v842 = vsub.f32 %v834, %v840
      %v843 = vmul.f32 %v841, 1.442695
      %v844 = vpow.pop %v843
      %v845 = vmul.f32 %v842, 1.442695
      %v846 = vpow.pop %v845
      %v847 = vsel %vm799, %v844, 0.0
      %848 = vadd.xlane.f32.xlu0 %v847
      %v849 = vpop.xlane.xlu0 %848
      %v850 = vsel %vm799, %v846, 0.0
      %851 = vadd.xlane.f32.xlu0 %v850
      %v852 = vpop.xlane.xlu0 %851
      %v853 = vrcp.pop %v849
      %v854 = vrcp.pop %v852
      %v855 = vmul.f32 %v844, %v853
      %v856 = vmul.f32 %v846, %v854
      %857 = vrot.lane.b32.xlu0 %v788, 64
      %v858 = vpop.permute.xlu0 %857
      %859 = vrot.lane.b32.xlu0 %v791, 64
      %v860 = vpop.permute.xlu0 %859
      %v864 = vsel %vm799, %v855, 0
      %v867 = vsel %vm799, %v856, 0
      %869 = vmatpush.msra.mxu0 0.0
      %870 = vmatpush.msra.mxu0 0.0
      %871 = vmatpush.msra.mxu0 0.0
      %872 = vmatpush.msra.mxu0 0.0
      %873 = vmatpush.msra.mxu0 0.0
      %874 = vmatpush.msra.mxu0 0.0
      %875 = vmatpush.msra.mxu0 0.0
      %876 = vmatpush.msra.mxu0 0.0
      %877 = vmatpush.msra.mxu0 0.0
      %878 = vmatpush.msra.mxu0 0.0
      %879 = vmatpush.msra.mxu0 0.0
      %880 = vmatpush.msra.mxu0 0.0
      %881 = vmatpush.msra.mxu0 0.0
      %882 = vmatpush.msra.mxu0 0.0
      %883 = vmatpush.msra.mxu0 %v860
      %884 = vmatpush.msra.mxu0 %v858
      %885 = vmatmul.f32.gmra.mxu0 %v864
      %v886 = vpop.f32.mrf.mxu0
      %v887 = vadd.f32 0.0, %v886
      %888 = vmatmul.f32.gmra.mxu0 %v867
      %v889 = vpop.f32.mrf.mxu0
      %v890 = vadd.f32 0.0, %v889
      %891 = vdwg.mxu0
      %892 = vrot.lane.b32.xlu0 %v788, 112
      %v893 = vpop.permute.xlu0 %892
      %894 = vrot.lane.b32.xlu0 %v791, 112
      %v895 = vpop.permute.xlu0 %894
      %896 = vrot.lane.b32.xlu0 %v788, 80
      %v897 = vpop.permute.xlu0 %896
      %898 = vrot.lane.b32.xlu0 %v791, 80
      %v899 = vpop.permute.xlu0 %898
      %v900 = vsel %vm799, %v893, 0
      %v902 = vsel %vm799, %v895, 0
      %v904 = vsel %vm799, %v897, 0
      %v906 = vsel %vm799, %v899, 0
      %908 = vmatpush.xpose.msra.mxu0 0.0
      %909 = vmatpush.xpose.msra.mxu0 0.0
      %910 = vmatpush.xpose.msra.mxu0 0.0
      %911 = vmatpush.xpose.msra.mxu0 0.0
      %912 = vmatpush.xpose.msra.mxu0 0.0
      %913 = vmatpush.xpose.msra.mxu0 0.0
      %914 = vmatpush.xpose.msra.mxu0 0.0
      %915 = vmatpush.xpose.msra.mxu0 0.0
      %916 = vmatpush.xpose.msra.mxu0 0.0
      %917 = vmatpush.xpose.msra.mxu0 0.0
      %918 = vmatpush.xpose.msra.mxu0 0.0
      %919 = vmatpush.xpose.msra.mxu0 0.0
      %920 = vmatpush.xpose.msra.mxu0 0.0
      %921 = vmatpush.xpose.msra.mxu0 0.0
      %922 = vmatpush.xpose.msra.mxu0 %v906
      %923 = vmatpush.xpose.msra.mxu0 %v904
      %924 = vmatmul.f32.gmra.mxu0 %v900
      %v925 = vpop.f32.mrf.mxu0
      %v926 = vadd.f32 0.0, %v925
      %927 = vmatmul.f32.gmra.mxu0 %v902
      %v928 = vpop.f32.mrf.mxu0
      %v929 = vadd.f32 0.0, %v928
      %930 = vdwg.mxu0
      %v931 = vmul.f32 %v926, 0.25
      %v932 = vmul.f32 %v929, 0.25
      %v933 = vadd.f32 %v931, %v753
      %v934 = vadd.f32 %v932, %v754
      %v935 = vsel %vm799, %v933, -inf
      %936 = vmax.xlane.f32.xlu0 %v935
      %v937 = vpop.xlane.xlu0 %936
      %v938 = vsel %vm799, %v934, -inf
      %939 = vmax.xlane.f32.xlu0 %v938
      %v940 = vpop.xlane.xlu0 %939
      %v941 = vsub.f32 %v933, %v937
      %v942 = vsub.f32 %v934, %v940
      %v943 = vmul.f32 %v941, 1.442695
      %v944 = vpow.pop %v943
      %v945 = vmul.f32 %v942, 1.442695
      %v946 = vpow.pop %v945
      %v947 = vsel %vm799, %v944, 0.0
      %948 = vadd.xlane.f32.xlu0 %v947
      %v949 = vpop.xlane.xlu0 %948
      %v950 = vsel %vm799, %v946, 0.0
      %951 = vadd.xlane.f32.xlu0 %v950
      %v952 = vpop.xlane.xlu0 %951
      %v953 = vrcp.pop %v949
      %v954 = vrcp.pop %v952
      %v955 = vmul.f32 %v944, %v953
      %v956 = vmul.f32 %v946, %v954
      %957 = vrot.lane.b32.xlu0 %v788, 48
      %v958 = vpop.permute.xlu0 %957
      %959 = vrot.lane.b32.xlu0 %v791, 48
      %v960 = vpop.permute.xlu0 %959
      %v964 = vsel %vm799, %v955, 0
      %v967 = vsel %vm799, %v956, 0
      %969 = vmatpush.msra.mxu0 0.0
      %970 = vmatpush.msra.mxu0 0.0
      %971 = vmatpush.msra.mxu0 0.0
      %972 = vmatpush.msra.mxu0 0.0
      %973 = vmatpush.msra.mxu0 0.0
      %974 = vmatpush.msra.mxu0 0.0
      %975 = vmatpush.msra.mxu0 0.0
      %976 = vmatpush.msra.mxu0 0.0
      %977 = vmatpush.msra.mxu0 0.0
      %978 = vmatpush.msra.mxu0 0.0
      %979 = vmatpush.msra.mxu0 0.0
      %980 = vmatpush.msra.mxu0 0.0
      %981 = vmatpush.msra.mxu0 0.0
      %982 = vmatpush.msra.mxu0 0.0
      %983 = vmatpush.msra.mxu0 %v960
      %984 = vmatpush.msra.mxu0 %v958
      %985 = vmatmul.f32.gmra.mxu0 %v964
      %v986 = vpop.f32.mrf.mxu0
      %v987 = vadd.f32 0.0, %v986
      %988 = vmatmul.f32.gmra.mxu0 %v967
      %v989 = vpop.f32.mrf.mxu0
      %v990 = vadd.f32 0.0, %v989
      %991 = vdwg.mxu0
      %994 = vrot.lane.b32.xlu0 %v987, 16
      %v995 = vpop.permute.xlu0 %994
      %996 = vrot.lane.b32.xlu0 %v990, 16
      %v997 = vpop.permute.xlu0 %996
      %v1000 = vsel %vm799, %v887, %v995
      %v1001 = vsel %vm799, %v890, %v997
      %v1002 = vld [vmem:[%s647] sm:$0xff]
      %v1003 = vld [vmem:[%s647 + $0x8] sm:$0xff]
      %v1004 = vld [vmem:[%s647 + $0x10] sm:$0xff]
      %v1005 = vld [vmem:[%s647 + $0x18] sm:$0xff]
      %v1006 = vld [vmem:[%s650] sm:$0x1]
      %v1008 = vperm.slane %v1006, 0
      %v1011 = vsel %vm763, %v1000, 0
      %v1014 = vsel %vm763, %v1001, 0
      %1016 = vmatpush.msra.mxu0 0.0
      %1017 = vmatpush.msra.mxu0 0.0
      %1018 = vmatpush.msra.mxu0 0.0
      %1019 = vmatpush.msra.mxu0 0.0
      %1020 = vmatpush.msra.mxu0 0.0
      %1021 = vmatpush.msra.mxu0 0.0
      %1022 = vmatpush.msra.mxu0 0.0
      %1023 = vmatpush.msra.mxu0 0.0
      %1024 = vmatpush.msra.mxu0 0.0
      %1025 = vmatpush.msra.mxu0 0.0
      %1026 = vmatpush.msra.mxu0 0.0
      %1027 = vmatpush.msra.mxu0 0.0
      %1028 = vmatpush.msra.mxu0 %v1005
      %1029 = vmatpush.msra.mxu0 %v1004
      %1030 = vmatpush.msra.mxu0 %v1003
      %1031 = vmatpush.msra.mxu0 %v1002
      %1032 = vmatmul.f32.gmra.mxu0 %v1011
      %v1033 = vpop.f32.mrf.mxu0
      %v1034 = vadd.f32 %v1008, %v1033
      %1035 = vmatmul.f32.gmra.mxu0 %v1014
      %v1036 = vpop.f32.mrf.mxu0
      %v1037 = vadd.f32 %v1008, %v1036
      %1038 = vdwg.mxu0
      %v1039 = vadd.f32 %v751, %v1034
      %v1040 = vadd.f32 %v752, %v1037
      %v1041 = vld [vmem:[%s653] sm:$0x1]
      %v1042 = vld [vmem:[%s656] sm:$0x1]
      %v1043 = vsel %vm763, %v1039, 0.0
      %1044 = vadd.xlane.f32.xlu0 %v1043
      %v1045 = vpop.xlane.xlu0 %1044
      %v1046 = vsel %vm763, %v1040, 0.0
      %1047 = vadd.xlane.f32.xlu0 %v1046
      %v1048 = vpop.xlane.xlu0 %1047
      %v1049 = vrcp.pop 32.0
      %v1050 = vmul.f32 32.0, %v1049
      %v1051 = vsub.f32 1.0, %v1050
      %v1052 = vmul.f32 %v1049, %v1051
      %v1053 = vadd.f32 %v1049, %v1052
      %vm1054 = vweird.f32 %v1049
      %v1055 = vsel %vm1054, %v1049, %v1053
      %v1056 = vmul.f32 %v1045, %v1055
      %v1057 = vmul.f32 %v1048, %v1055
      %v1058 = vsub.f32 %v1039, %v1056
      %v1059 = vsub.f32 %v1040, %v1057
      %v1060 = vmul.f32 %v1058, %v1058
      %v1061 = vmul.f32 %v1059, %v1059
      %v1062 = vsel %vm763, %v1060, 0.0
      %1063 = vadd.xlane.f32.xlu0 %v1062
      %v1064 = vpop.xlane.xlu0 %1063
      %v1065 = vsel %vm763, %v1061, 0.0
      %1066 = vadd.xlane.f32.xlu0 %v1065
      %v1067 = vpop.xlane.xlu0 %1066
      %v1068 = vmul.f32 %v1064, %v1055
      %v1069 = vmul.f32 %v1067, %v1055
      %v1070 = vadd.f32 %v1068, 1e-12
      %v1071 = vadd.f32 %v1069, 1e-12
      %v1072 = vrsqrt.pop %v1070
      %v1073 = vmul.f32 %v1072, %v1070
      %v1074 = vmul.f32 %v1073, %v1072
      %v1075 = vmul.f32 0.5, %v1074
      %v1076 = vsub.f32 1.5, %v1075
      %v1077 = vmul.f32 %v1072, %v1076
      %vm1078 = vweird.f32 %v1070
      %vm1079 = vweird.f32 %v1072
      %vm1080 = vmor %vm1078, %vm1079
      %v1081 = vsel %vm1080, %v1072, %v1077
      %v1082 = vrsqrt.pop %v1071
      %v1083 = vmul.f32 %v1082, %v1071
      %v1084 = vmul.f32 %v1083, %v1082
      %v1085 = vmul.f32 0.5, %v1084
      %v1086 = vsub.f32 1.5, %v1085
      %v1087 = vmul.f32 %v1082, %v1086
      %vm1088 = vweird.f32 %v1071
      %vm1089 = vweird.f32 %v1082
      %vm1090 = vmor %vm1088, %vm1089
      %v1091 = vsel %vm1090, %v1082, %v1087
      %v1092 = vmul.f32 %v1058, %v1081
      %v1093 = vmul.f32 %v1059, %v1091
      %v1095 = vperm.slane %v1041, 0
      %v1097 = vmul.f32 %v1092, %v1095
      %v1098 = vmul.f32 %v1093, %v1095
      %v1100 = vperm.slane %v1042, 0
      %v1102 = vadd.f32 %v1097, %v1100
      %v1103 = vadd.f32 %v1098, %v1100
      %v1104 = vld [vmem:[%s661] sm:$0xff]
      %v1105 = vld [vmem:[%s661 + $0x8] sm:$0xff]
      %v1106 = vld [vmem:[%s661 + $0x10] sm:$0xff]
      %v1107 = vld [vmem:[%s661 + $0x18] sm:$0xff]
      %v1108 = vld [vmem:[%s664] sm:$0x1]
      %v1110 = vperm.slane %v1108, 0
      %v1113 = vsel %vm763, %v1102, 0
      %v1116 = vsel %vm763, %v1103, 0
      %1118 = vmatpush.msra.mxu0 0.0
      %1119 = vmatpush.msra.mxu0 0.0
      %1120 = vmatpush.msra.mxu0 0.0
      %1121 = vmatpush.msra.mxu0 0.0
      %1122 = vmatpush.msra.mxu0 0.0
      %1123 = vmatpush.msra.mxu0 0.0
      %1124 = vmatpush.msra.mxu0 0.0
      %1125 = vmatpush.msra.mxu0 0.0
      %1126 = vmatpush.msra.mxu0 0.0
      %1127 = vmatpush.msra.mxu0 0.0
      %1128 = vmatpush.msra.mxu0 0.0
      %1129 = vmatpush.msra.mxu0 0.0
      %1130 = vmatpush.msra.mxu0 %v1107
      %1131 = vmatpush.msra.mxu0 %v1106
      %1132 = vmatpush.msra.mxu0 %v1105
      %1133 = vmatpush.msra.mxu0 %v1104
      %1134 = vmatmul.f32.gmra.mxu0 %v1113
      %v1135 = vpop.f32.mrf.mxu0
      %v1136 = vadd.f32 %v1110, %v1135
      %1137 = vmatmul.f32.gmra.mxu0 %v1116
      %v1138 = vpop.f32.mrf.mxu0
      %v1139 = vadd.f32 %v1110, %v1138
      %1140 = vdwg.mxu0
      %v1141 = vmul.f32 %v1136, 0.5
      %v1142 = vmul.f32 %v1139, 0.5
      %v1143 = vmul.f32 %v1136, 0.70710677
      %v1144 = vmul.f32 %v1139, 0.70710677
      %vm1145 = vcmp.ge.f32.partialorder %v1143, 0.0
      %vm1146 = vcmp.ge.f32.partialorder %v1144, 0.0
      %v1147 = vsel %vm1145, 1.0, -1.0
      %v1148 = vsel %vm1146, 1.0, -1.0
      %v1149 = vand.u32 2147483647, %v1143
      %v1150 = vand.u32 2147483647, %v1144
      %v1151 = vmul.f32 %v1149, 0.3275911
      %v1152 = vmul.f32 %v1150, 0.3275911
      %v1153 = vadd.f32 %v1151, 1.0
      %v1154 = vadd.f32 %v1152, 1.0
      %v1155 = vrcp.pop %v1153
      %v1156 = vmul.f32 %v1153, %v1155
      %v1157 = vsub.f32 1.0, %v1156
      %v1158 = vmul.f32 %v1155, %v1157
      %v1159 = vadd.f32 %v1155, %v1158
      %vm1160 = vweird.f32 %v1153
      %vm1161 = vweird.f32 %v1155
      %vm1162 = vmor %vm1160, %vm1161
      %v1163 = vsel %vm1162, %v1155, %v1159
      %v1164 = vand.u32 2147483647, %v1153
      %vm1165 = vcmp.eq.f32.partialorder %v1164, 8.507059e+37
      %v1166 = vand.u32 %v1153, 2147483648
      %v1167 = vor.u32 1.1754944e-38, %v1166
      %v1168 = vsel %vm1165, %v1167, %v1163
      %v1169 = vmul.f32 1.0, %v1168
      %v1170 = vrcp.pop %v1154
      %v1171 = vmul.f32 %v1154, %v1170
      %v1172 = vsub.f32 1.0, %v1171
      %v1173 = vmul.f32 %v1170, %v1172
      %v1174 = vadd.f32 %v1170, %v1173
      %vm1175 = vweird.f32 %v1154
      %vm1176 = vweird.f32 %v1170
      %vm1177 = vmor %vm1175, %vm1176
      %v1178 = vsel %vm1177, %v1170, %v1174
      %v1179 = vand.u32 2147483647, %v1154
      %vm1180 = vcmp.eq.f32.partialorder %v1179, 8.507059e+37
      %v1181 = vand.u32 %v1154, 2147483648
      %v1182 = vor.u32 1.1754944e-38, %v1181
      %v1183 = vsel %vm1180, %v1182, %v1178
      %v1184 = vmul.f32 1.0, %v1183
      %v1185 = vmul.f32 %v1169, 1.0614054
      %v1186 = vmul.f32 %v1184, 1.0614054
      %v1187 = vadd.f32 %v1185, -1.4531521
      %v1188 = vadd.f32 %v1186, -1.4531521
      %v1189 = vmul.f32 %v1187, %v1169
      %v1190 = vmul.f32 %v1188, %v1184
      %v1191 = vadd.f32 %v1189, 1.4214138
      %v1192 = vadd.f32 %v1190, 1.4214138
      %v1193 = vmul.f32 %v1191, %v1169
      %v1194 = vmul.f32 %v1192, %v1184
      %v1195 = vadd.f32 %v1193, -0.28449672
      %v1196 = vadd.f32 %v1194, -0.28449672
      %v1197 = vmul.f32 %v1195, %v1169
      %v1198 = vmul.f32 %v1196, %v1184
      %v1199 = vadd.f32 %v1197, 0.2548296
      %v1200 = vadd.f32 %v1198, 0.2548296
      %v1201 = vmul.f32 %v1199, %v1169
      %v1202 = vmul.f32 %v1200, %v1184
      %v1203 = vsub.f32 0.0, %v1149
      %v1204 = vsub.f32 0.0, %v1150
      %v1205 = vmul.f32 %v1203, %v1149
      %v1206 = vmul.f32 %v1204, %v1150
      %v1207 = vmul.f32 %v1205, 1.442695
      %v1208 = vpow.pop %v1207
      %v1209 = vmul.f32 %v1206, 1.442695
      %v1210 = vpow.pop %v1209
      %v1211 = vmul.f32 %v1201, %v1208
      %v1212 = vmul.f32 %v1202, %v1210
      %v1213 = vsub.f32 1.0, %v1211
      %v1214 = vsub.f32 1.0, %v1212
      %v1215 = vmul.f32 %v1147, %v1213
      %v1216 = vmul.f32 %v1148, %v1214
      %v1217 = vadd.f32 %v1215, 1.0
      %v1218 = vadd.f32 %v1216, 1.0
      %v1219 = vmul.f32 %v1141, %v1217
      %v1220 = vmul.f32 %v1142, %v1218
      %v1221 = vld [vmem:[%s669] sm:$0xff]
      %v1222 = vld [vmem:[%s669 + $0x8] sm:$0xff]
      %v1223 = vld [vmem:[%s669 + $0x10] sm:$0xff]
      %v1224 = vld [vmem:[%s669 + $0x18] sm:$0xff]
      %v1225 = vld [vmem:[%s669 + $0x20] sm:$0xff]
      %v1226 = vld [vmem:[%s669 + $0x28] sm:$0xff]
      %v1227 = vld [vmem:[%s669 + $0x30] sm:$0xff]
      %v1228 = vld [vmem:[%s669 + $0x38] sm:$0xff]
      %v1229 = vld [vmem:[%s672] sm:$0x1]
      %v1231 = vperm.slane %v1229, 0
      %vm1233 = vcmask 523264
      %v1235 = vsel %vm1233, %v1219, 0
      %v1238 = vsel %vm1233, %v1220, 0
      %1240 = vmatpush.msra.mxu0 0.0
      %1241 = vmatpush.msra.mxu0 0.0
      %1242 = vmatpush.msra.mxu0 0.0
      %1243 = vmatpush.msra.mxu0 0.0
      %1244 = vmatpush.msra.mxu0 0.0
      %1245 = vmatpush.msra.mxu0 0.0
      %1246 = vmatpush.msra.mxu0 0.0
      %1247 = vmatpush.msra.mxu0 0.0
      %1248 = vmatpush.msra.mxu0 %v1228
      %1249 = vmatpush.msra.mxu0 %v1227
      %1250 = vmatpush.msra.mxu0 %v1226
      %1251 = vmatpush.msra.mxu0 %v1225
      %1252 = vmatpush.msra.mxu0 %v1224
      %1253 = vmatpush.msra.mxu0 %v1223
      %1254 = vmatpush.msra.mxu0 %v1222
      %1255 = vmatpush.msra.mxu0 %v1221
      %1256 = vmatmul.f32.gmra.mxu0 %v1235
      %v1257 = vpop.f32.mrf.mxu0
      %v1258 = vadd.f32 %v1231, %v1257
      %1259 = vmatmul.f32.gmra.mxu0 %v1238
      %v1260 = vpop.f32.mrf.mxu0
      %v1261 = vadd.f32 %v1231, %v1260
      %1262 = vdwg.mxu0
      %v1263 = vadd.f32 %v1102, %v1258
      %v1264 = vadd.f32 %v1103, %v1261
      %v1265 = vld [vmem:[%s675] sm:$0x1]
      %v1266 = vld [vmem:[%s678] sm:$0x1]
      %v1267 = vsel %vm763, %v1263, 0.0
      %1268 = vadd.xlane.f32.xlu0 %v1267
      %v1269 = vpop.xlane.xlu0 %1268
      %v1270 = vsel %vm763, %v1264, 0.0
      %1271 = vadd.xlane.f32.xlu0 %v1270
      %v1272 = vpop.xlane.xlu0 %1271
      %v1273 = vmul.f32 %v1269, %v1055
      %v1274 = vmul.f32 %v1272, %v1055
      %v1275 = vsub.f32 %v1263, %v1273
      %v1276 = vsub.f32 %v1264, %v1274
      %v1277 = vmul.f32 %v1275, %v1275
      %v1278 = vmul.f32 %v1276, %v1276
      %v1279 = vsel %vm763, %v1277, 0.0
      %1280 = vadd.xlane.f32.xlu0 %v1279
      %v1281 = vpop.xlane.xlu0 %1280
      %v1282 = vsel %vm763, %v1278, 0.0
      %1283 = vadd.xlane.f32.xlu0 %v1282
      %v1284 = vpop.xlane.xlu0 %1283
      %v1285 = vmul.f32 %v1281, %v1055
      %v1286 = vmul.f32 %v1284, %v1055
      %v1287 = vadd.f32 %v1285, 1e-12
      %v1288 = vadd.f32 %v1286, 1e-12
      %v1289 = vrsqrt.pop %v1287
      %v1290 = vmul.f32 %v1289, %v1287
      %v1291 = vmul.f32 %v1290, %v1289
      %v1292 = vmul.f32 0.5, %v1291
      %v1293 = vsub.f32 1.5, %v1292
      %v1294 = vmul.f32 %v1289, %v1293
      %vm1295 = vweird.f32 %v1287
      %vm1296 = vweird.f32 %v1289
      %vm1297 = vmor %vm1295, %vm1296
      %v1298 = vsel %vm1297, %v1289, %v1294
      %v1299 = vrsqrt.pop %v1288
      %v1300 = vmul.f32 %v1299, %v1288
      %v1301 = vmul.f32 %v1300, %v1299
      %v1302 = vmul.f32 0.5, %v1301
      %v1303 = vsub.f32 1.5, %v1302
      %v1304 = vmul.f32 %v1299, %v1303
      %vm1305 = vweird.f32 %v1288
      %vm1306 = vweird.f32 %v1299
      %vm1307 = vmor %vm1305, %vm1306
      %v1308 = vsel %vm1307, %v1299, %v1304
      %v1309 = vmul.f32 %v1275, %v1298
      %v1310 = vmul.f32 %v1276, %v1308
      %v1312 = vperm.slane %v1265, 0
      %v1314 = vmul.f32 %v1309, %v1312
      %v1315 = vmul.f32 %v1310, %v1312
      %v1317 = vperm.slane %v1266, 0
      %v1319 = vadd.f32 %v1314, %v1317
      %v1320 = vadd.f32 %v1315, %v1317
      %1321 = vst.msk [vmem:[%s16] sm:$0xff] %vm763, %v1319
      %1322 = vst.msk [vmem:[%s16 + $0x8] sm:$0xff] %vm763, %v1320
      // Predicated region
      $region89: #{bert_model_forward.1} parent=83 // pred_check
        %p1323 = pneg %p436
      $region90: #{bert_model_forward.1} parent=83 // pred_check_branch
        %1325 = sbr.rel (%p1323) target = $region92
      $region91: #{bert_model_forward.1} parent=83 // pred_region
        _
      $region92: #{bert_model_forward.1} parent=83 // pred_fallthru
        _
      // Predicated region
      $region93: #{bert_model_forward.1} parent=83 // pred_check
        %p1326 = pneg %p436
      $region94: #{bert_model_forward.1} parent=83 // pred_check_branch
        %1328 = sbr.rel (%p1326) target = $region96
      $region95: #{bert_model_forward.1} parent=83 // pred_region
        _
      $region96: #{bert_model_forward.1} parent=83 // pred_fallthru
        _
    $region84: #{bert_model_forward.1} parent=5 // pred_fallthru
      _
    %p1329 = scmp.le.s32.totalorder 2, %s22
    // Predicated region
    $region97: #{bert_model_forward.1} parent=5 // pred_check
      %p1330 = pneg %p1329
    $region98: #{bert_model_forward.1} parent=5 // pred_check_branch
      %1332 = sbr.rel (%p1330) target = $region100
    $region99: #{bert_model_forward.1} parent=5 // pred_region
      %s1333 = ssub.s32 %s22, 2
    $region100: #{bert_model_forward.1} parent=5 // pred_fallthru
      _
  $region6: #{bert_model_forward.1} parent=0 // loop_footer
    %s26 = sadd.s32 1, %s22
  $region7: #{bert_model_forward.1} parent=0 // loop_footer_branch
    %21 = sbr.rel target = $region3
  $region8: #{bert_model_forward.1} parent=0 // loop_exit
    _

</llo_original>
